<compile_context>
chip_gen: v7x
topology: tpu7x:2x2x1
jax: 0.10.0
libtpu: 0.0.40
codegen_flags: <defaults>
</compile_context>

<pallas_src>
import functools
import math

import jax
import jax.numpy as jnp
from jax.experimental import pallas as pl
from jax.experimental.pallas import tpu as pltpu


# ----------------------------------------------------------------------------
# Fused MHA kernel
# ----------------------------------------------------------------------------

def _fused_mha_kernel(x_ref, wqkv_ref, bqkv_ref, wproj_ref, bproj_ref, o_ref,
                      qkv_scratch, ctx_scratch, *, num_heads, head_dim, scale):
    """One batch element: out = softmax(q k^T / sqrt(Dh)) v  ->  projection.

    x_ref:      (1, S, D)
    wqkv_ref:   (D, 3D)     fused QKV weight, (in, out) layout
    bqkv_ref:   (1, 3D)
    wproj_ref:  (D, D)
    bproj_ref:  (1, D)
    o_ref:      (1, S, D)
    qkv_scratch:(S, 3D) VMEM f32
    ctx_scratch:(S, D)  VMEM f32
    """
    D = num_heads * head_dim
    xs = x_ref[0].astype(jnp.float32)                               # (S, D)

    # ---- QKV projection: one lane-dense MXU matmul (N = 3*D) ----
    qkv_scratch[...] = (
        jnp.dot(xs, wqkv_ref[...].astype(jnp.float32),
                preferred_element_type=jnp.float32) + bqkv_ref[...])

    # ---- per-head scaled dot-product attention (statically unrolled) ----
    # Column layout of qkv matches torch's reshape(B, S, 3, H, Dh):
    #   Q -> cols [0, D), K -> [D, 2D), V -> [2D, 3D); head h at offset h*Dh.
    for h in range(num_heads):
        lo = h * head_dim
        q = qkv_scratch[:, lo:lo + head_dim]                        # (S, Dh)
        k = qkv_scratch[:, D + lo:D + lo + head_dim]                # (S, Dh)
        v = qkv_scratch[:, 2 * D + lo:2 * D + lo + head_dim]        # (S, Dh)

        # Contract on the last dims -> no explicit K transpose materialized.
        s = jax.lax.dot_general(
            q, k, (((1,), (1,)), ((), ())),
            preferred_element_type=jnp.float32) * scale             # (S, S)
        s = s - jnp.max(s, axis=-1, keepdims=True)
        p = jnp.exp(s)
        p = p / jnp.sum(p, axis=-1, keepdims=True)
        # Dropout on attention probabilities is identity (eval semantics).
        ctx_scratch[:, lo:lo + head_dim] = jnp.dot(
            p, v, preferred_element_type=jnp.float32)               # (S, Dh)

    # ---- output projection on the lane-dense (S, D) context ----
    out = (jnp.dot(ctx_scratch[...], wproj_ref[...].astype(jnp.float32),
                   preferred_element_type=jnp.float32) + bproj_ref[...])
    o_ref[0] = out.astype(o_ref.dtype)


def multi_head_attention(x, params, num_heads):
    """x: (B, S, D) -> (B, S, D).  Single fused pallas_call, grid over batch."""
    B, S, D = x.shape
    assert D % num_heads == 0
    head_dim = D // num_heads
    scale = 1.0 / math.sqrt(head_dim)

    kernel = functools.partial(_fused_mha_kernel, num_heads=num_heads,
                               head_dim=head_dim, scale=scale)
    return pl.pallas_call(
        kernel,
        out_shape=jax.ShapeDtypeStruct((B, S, D), jnp.float32),
        grid=(B,),
        in_specs=[
            pl.BlockSpec((1, S, D), lambda b: (b, 0, 0)),        # x
            pl.BlockSpec((D, 3 * D), lambda b: (0, 0)),          # qkv_w (resident)
            pl.BlockSpec((1, 3 * D), lambda b: (0, 0)),          # qkv_b
            pl.BlockSpec((D, D), lambda b: (0, 0)),              # proj_w (resident)
            pl.BlockSpec((1, D), lambda b: (0, 0)),              # proj_b
        ],
        out_specs=pl.BlockSpec((1, S, D), lambda b: (b, 0, 0)),
        scratch_shapes=[
            pltpu.VMEM((S, 3 * D), jnp.float32),                 # qkv scratch
            pltpu.VMEM((S, D), jnp.float32),                     # context scratch
        ],
        compiler_params=pltpu.CompilerParams(
            dimension_semantics=("parallel",)),
    )(x,
      params["qkv_w"], params["qkv_b"].reshape(1, 3 * D),
      params["proj_w"], params["proj_b"].reshape(1, D))


# ----------------------------------------------------------------------------
# Pure-JAX reference (mirrors the PyTorch forward exactly, eval mode)
# ----------------------------------------------------------------------------

def mha_reference(x, params, num_heads):
    B, S, D = x.shape
    Dh = D // num_heads
    hp = jax.lax.Precision.HIGHEST
    qkv = jnp.einsum("bsd,de->bse", x, params["qkv_w"], precision=hp)
    qkv = qkv + params["qkv_b"]
    qkv = qkv.reshape(B, S, 3, num_heads, Dh).transpose(2, 0, 3, 1, 4)
    q, k, v = qkv[0], qkv[1], qkv[2]                                # (B, H, S, Dh)
    s = jnp.einsum("bhqd,bhkd->bhqk", q, k, precision=hp) / math.sqrt(Dh)
    p = jax.nn.softmax(s, axis=-1)
    ctx = jnp.einsum("bhqk,bhkd->bhqd", p, v, precision=hp)
    ctx = ctx.transpose(0, 2, 1, 3).reshape(B, S, D)
    out = jnp.einsum("bsd,de->bse", ctx, params["proj_w"], precision=hp)
    return out + params["proj_b"]


# ----------------------------------------------------------------------------
# Main
# ----------------------------------------------------------------------------

if __name__ == "__main__":
    # Small shapes consistent with the module (embed_dim divisible by heads,
    # lane-aligned D, sublane-aligned S).
    B, S, D, H = 2, 16, 128, 4

    key = jax.random.PRNGKey(0)
    kx, kw1, kb1, kw2, kb2 = jax.random.split(key, 5)
    x = jax.random.normal(kx, (B, S, D), jnp.float32)
    params = dict(
        qkv_w=jax.random.normal(kw1, (D, 3 * D), jnp.float32) * 0.02,
        qkv_b=jax.random.normal(kb1, (3 * D,), jnp.float32) * 0.02,
        proj_w=jax.random.normal(kw2, (D, D), jnp.float32) * 0.02,
        proj_b=jax.random.normal(kb2, (D,), jnp.float32) * 0.02,
    )

    fwd = jax.jit(lambda xi, pr: multi_head_attention(xi, pr, H))
    out = fwd(x, params)
    jax.block_until_ready(out)

    ref = mha_reference(x, params, H)
    assert out.shape == (B, S, D)
    assert bool(jnp.all(jnp.isfinite(out)))
    max_err = float(jnp.max(jnp.abs(out - ref)))
    assert bool(jnp.allclose(out, ref, atol=1e-5, rtol=1e-3)), max_err

    print("KERNEL_OK")
</pallas_src>

<mosaic_0001>
module attributes {stable_mosaic.version = 11 : i64} {
  func.func @_fused_mha_kernel(%arg0: i32, %arg1: memref<1x16x128xf32, #tpu.memory_space<vmem>>, %arg2: memref<128x384xf32, #tpu.memory_space<vmem>>, %arg3: memref<1x384xf32, #tpu.memory_space<vmem>>, %arg4: memref<128x128xf32, #tpu.memory_space<vmem>>, %arg5: memref<1x128xf32, #tpu.memory_space<vmem>>, %arg6: memref<1x16x128xf32, #tpu.memory_space<vmem>>, %arg7: memref<16x384xf32, #tpu.memory_space<vmem>>, %arg8: memref<16x128xf32, #tpu.memory_space<vmem>>) attributes {dimension_semantics = [#tpu.dimension_semantics<parallel>], iteration_bounds = array<i64: 2>, scalar_prefetch = 0 : i64, scratch_operands = 2 : i64, tpu.core_type = #tpu.core_type<tc>, window_params = [{transform_indices = @transform_0, window_bounds = array<i64: 1, 16, 128>}, {pipeline_mode = #tpu.pipeline_mode<synchronous>, transform_indices = @transform_1, window_bounds = array<i64: 128, 384>}, {pipeline_mode = #tpu.pipeline_mode<synchronous>, transform_indices = @transform_2, window_bounds = array<i64: 1, 384>}, {pipeline_mode = #tpu.pipeline_mode<synchronous>, transform_indices = @transform_3, window_bounds = array<i64: 128, 128>}, {pipeline_mode = #tpu.pipeline_mode<synchronous>, transform_indices = @transform_4, window_bounds = array<i64: 1, 128>}, {transform_indices = @transform_5, window_bounds = array<i64: 1, 16, 128>}]} {
    %c0 = arith.constant 0 : index
    %c0_0 = arith.constant 0 : index
    %c0_1 = arith.constant 0 : index
    %0 = vector.load %arg1[%c0, %c0_0, %c0_1] : memref<1x16x128xf32, #tpu.memory_space<vmem>>, vector<1x16x128xf32>
    %1 = vector.shape_cast %0 : vector<1x16x128xf32> to vector<16x128xf32>
    %c0_2 = arith.constant 0 : index
    %c0_3 = arith.constant 0 : index
    %2 = vector.load %arg2[%c0_2, %c0_3] : memref<128x384xf32, #tpu.memory_space<vmem>>, vector<128x384xf32>
    %cst = arith.constant dense<0.000000e+00> : vector<16x384xf32>
    %3 = tpu.matmul %1, %2, %cst {dimension_numbers = #tpu.dot_dimension_numbers<[1], [0], [0], [1], [0, 0, 1, 1], [], []>} : vector<16x128xf32>, vector<128x384xf32>, vector<16x384xf32> -> vector<16x384xf32>
    %c0_4 = arith.constant 0 : index
    %c0_5 = arith.constant 0 : index
    %4 = vector.load %arg3[%c0_4, %c0_5] : memref<1x384xf32, #tpu.memory_space<vmem>>, vector<1x384xf32>
    %5 = vector.broadcast %4 : vector<1x384xf32> to vector<16x384xf32>
    %6 = arith.addf %3, %5 : vector<16x384xf32>
    %c0_6 = arith.constant 0 : index
    %c0_7 = arith.constant 0 : index
    %7 = vector.load %arg7[%c0_6, %c0_7] : memref<16x384xf32, #tpu.memory_space<vmem>>, vector<16x384xf32>
    tpu.vector_store %arg7[%c0_6, %c0_7], %6 {strides = array<i32>} : memref<16x384xf32, #tpu.memory_space<vmem>>, vector<16x384xf32>,
    %c0_8 = arith.constant 0 : index
    %c0_9 = arith.constant 0 : index
    %8 = vector.load %arg7[%c0_8, %c0_9] : memref<16x384xf32, #tpu.memory_space<vmem>>, vector<16x32xf32>
    %c0_10 = arith.constant 0 : index
    %c128 = arith.constant 128 : index
    %9 = vector.load %arg7[%c0_10, %c128] : memref<16x384xf32, #tpu.memory_space<vmem>>, vector<16x32xf32>
    %c0_11 = arith.constant 0 : index
    %c256 = arith.constant 256 : index
    %10 = vector.load %arg7[%c0_11, %c256] : memref<16x384xf32, #tpu.memory_space<vmem>>, vector<16x32xf32>
    %cst_12 = arith.constant dense<0.000000e+00> : vector<16x16xf32>
    %11 = tpu.matmul %8, %9, %cst_12 {dimension_numbers = #tpu.dot_dimension_numbers<[1], [1], [0], [0], [0, 0, 1, 0], [], []>} : vector<16x32xf32>, vector<16x32xf32>, vector<16x16xf32> -> vector<16x16xf32>
    %cst_13 = arith.constant 0.176776692 : f32
    %12 = vector.broadcast %cst_13 : f32 to vector<16x16xf32>
    %13 = arith.mulf %11, %12 : vector<16x16xf32>
    %cst_14 = arith.constant dense<0xFF800000> : vector<16xf32>
    %14 = vector.multi_reduction <maximumf>, %13, %cst_14 [1] : vector<16x16xf32> to vector<16xf32>
    %15 = vector.shape_cast %14 : vector<16xf32> to vector<16x1xf32>
    %16 = vector.broadcast %15 : vector<16x1xf32> to vector<16x16xf32>
    %17 = arith.subf %13, %16 : vector<16x16xf32>
    %18 = math.exp %17 : vector<16x16xf32>
    %cst_15 = arith.constant dense<0.000000e+00> : vector<16xf32>
    %19 = vector.multi_reduction <add>, %18, %cst_15 [1] : vector<16x16xf32> to vector<16xf32>
    %20 = vector.shape_cast %19 : vector<16xf32> to vector<16x1xf32>
    %21 = vector.broadcast %20 : vector<16x1xf32> to vector<16x16xf32>
    %22 = arith.divf %18, %21 : vector<16x16xf32>
    %cst_16 = arith.constant dense<0.000000e+00> : vector<16x32xf32>
    %23 = tpu.matmul %22, %10, %cst_16 {dimension_numbers = #tpu.dot_dimension_numbers<[1], [0], [0], [1], [0, 0, 1, 1], [], []>} : vector<16x16xf32>, vector<16x32xf32>, vector<16x32xf32> -> vector<16x32xf32>
    %c0_17 = arith.constant 0 : index
    %c0_18 = arith.constant 0 : index
    %24 = vector.load %arg8[%c0_17, %c0_18] : memref<16x128xf32, #tpu.memory_space<vmem>>, vector<16x32xf32>
    tpu.vector_store %arg8[%c0_17, %c0_18], %23 {strides = array<i32>} : memref<16x128xf32, #tpu.memory_space<vmem>>, vector<16x32xf32>,
    %c0_19 = arith.constant 0 : index
    %c32 = arith.constant 32 : index
    %25 = vector.load %arg7[%c0_19, %c32] : memref<16x384xf32, #tpu.memory_space<vmem>>, vector<16x32xf32>
    %c0_20 = arith.constant 0 : index
    %c160 = arith.constant 160 : index
    %26 = vector.load %arg7[%c0_20, %c160] : memref<16x384xf32, #tpu.memory_space<vmem>>, vector<16x32xf32>
    %c0_21 = arith.constant 0 : index
    %c288 = arith.constant 288 : index
    %27 = vector.load %arg7[%c0_21, %c288] : memref<16x384xf32, #tpu.memory_space<vmem>>, vector<16x32xf32>
    %cst_22 = arith.constant dense<0.000000e+00> : vector<16x16xf32>
    %28 = tpu.matmul %25, %26, %cst_22 {dimension_numbers = #tpu.dot_dimension_numbers<[1], [1], [0], [0], [0, 0, 1, 0], [], []>} : vector<16x32xf32>, vector<16x32xf32>, vector<16x16xf32> -> vector<16x16xf32>
    %cst_23 = arith.constant 0.176776692 : f32
    %29 = vector.broadcast %cst_23 : f32 to vector<16x16xf32>
    %30 = arith.mulf %28, %29 : vector<16x16xf32>
    %cst_24 = arith.constant dense<0xFF800000> : vector<16xf32>
    %31 = vector.multi_reduction <maximumf>, %30, %cst_24 [1] : vector<16x16xf32> to vector<16xf32>
    %32 = vector.shape_cast %31 : vector<16xf32> to vector<16x1xf32>
    %33 = vector.broadcast %32 : vector<16x1xf32> to vector<16x16xf32>
    %34 = arith.subf %30, %33 : vector<16x16xf32>
    %35 = math.exp %34 : vector<16x16xf32>
    %cst_25 = arith.constant dense<0.000000e+00> : vector<16xf32>
    %36 = vector.multi_reduction <add>, %35, %cst_25 [1] : vector<16x16xf32> to vector<16xf32>
    %37 = vector.shape_cast %36 : vector<16xf32> to vector<16x1xf32>
    %38 = vector.broadcast %37 : vector<16x1xf32> to vector<16x16xf32>
    %39 = arith.divf %35, %38 : vector<16x16xf32>
    %cst_26 = arith.constant dense<0.000000e+00> : vector<16x32xf32>
    %40 = tpu.matmul %39, %27, %cst_26 {dimension_numbers = #tpu.dot_dimension_numbers<[1], [0], [0], [1], [0, 0, 1, 1], [], []>} : vector<16x16xf32>, vector<16x32xf32>, vector<16x32xf32> -> vector<16x32xf32>
    %c0_27 = arith.constant 0 : index
    %c32_28 = arith.constant 32 : index
    %41 = vector.load %arg8[%c0_27, %c32_28] : memref<16x128xf32, #tpu.memory_space<vmem>>, vector<16x32xf32>
    tpu.vector_store %arg8[%c0_27, %c32_28], %40 {strides = array<i32>} : memref<16x128xf32, #tpu.memory_space<vmem>>, vector<16x32xf32>,
    %c0_29 = arith.constant 0 : index
    %c64 = arith.constant 64 : index
    %42 = vector.load %arg7[%c0_29, %c64] : memref<16x384xf32, #tpu.memory_space<vmem>>, vector<16x32xf32>
    %c0_30 = arith.constant 0 : index
    %c192 = arith.constant 192 : index
    %43 = vector.load %arg7[%c0_30, %c192] : memref<16x384xf32, #tpu.memory_space<vmem>>, vector<16x32xf32>
    %c0_31 = arith.constant 0 : index
    %c320 = arith.constant 320 : index
    %44 = vector.load %arg7[%c0_31, %c320] : memref<16x384xf32, #tpu.memory_space<vmem>>, vector<16x32xf32>
    %cst_32 = arith.constant dense<0.000000e+00> : vector<16x16xf32>
    %45 = tpu.matmul %42, %43, %cst_32 {dimension_numbers = #tpu.dot_dimension_numbers<[1], [1], [0], [0], [0, 0, 1, 0], [], []>} : vector<16x32xf32>, vector<16x32xf32>, vector<16x16xf32> -> vector<16x16xf32>
    %cst_33 = arith.constant 0.176776692 : f32
    %46 = vector.broadcast %cst_33 : f32 to vector<16x16xf32>
    %47 = arith.mulf %45, %46 : vector<16x16xf32>
    %cst_34 = arith.constant dense<0xFF800000> : vector<16xf32>
    %48 = vector.multi_reduction <maximumf>, %47, %cst_34 [1] : vector<16x16xf32> to vector<16xf32>
    %49 = vector.shape_cast %48 : vector<16xf32> to vector<16x1xf32>
    %50 = vector.broadcast %49 : vector<16x1xf32> to vector<16x16xf32>
    %51 = arith.subf %47, %50 : vector<16x16xf32>
    %52 = math.exp %51 : vector<16x16xf32>
    %cst_35 = arith.constant dense<0.000000e+00> : vector<16xf32>
    %53 = vector.multi_reduction <add>, %52, %cst_35 [1] : vector<16x16xf32> to vector<16xf32>
    %54 = vector.shape_cast %53 : vector<16xf32> to vector<16x1xf32>
    %55 = vector.broadcast %54 : vector<16x1xf32> to vector<16x16xf32>
    %56 = arith.divf %52, %55 : vector<16x16xf32>
    %cst_36 = arith.constant dense<0.000000e+00> : vector<16x32xf32>
    %57 = tpu.matmul %56, %44, %cst_36 {dimension_numbers = #tpu.dot_dimension_numbers<[1], [0], [0], [1], [0, 0, 1, 1], [], []>} : vector<16x16xf32>, vector<16x32xf32>, vector<16x32xf32> -> vector<16x32xf32>
    %c0_37 = arith.constant 0 : index
    %c64_38 = arith.constant 64 : index
    %58 = vector.load %arg8[%c0_37, %c64_38] : memref<16x128xf32, #tpu.memory_space<vmem>>, vector<16x32xf32>
    tpu.vector_store %arg8[%c0_37, %c64_38], %57 {strides = array<i32>} : memref<16x128xf32, #tpu.memory_space<vmem>>, vector<16x32xf32>,
    %c0_39 = arith.constant 0 : index
    %c96 = arith.constant 96 : index
    %59 = vector.load %arg7[%c0_39, %c96] : memref<16x384xf32, #tpu.memory_space<vmem>>, vector<16x32xf32>
    %c0_40 = arith.constant 0 : index
    %c224 = arith.constant 224 : index
    %60 = vector.load %arg7[%c0_40, %c224] : memref<16x384xf32, #tpu.memory_space<vmem>>, vector<16x32xf32>
    %c0_41 = arith.constant 0 : index
    %c352 = arith.constant 352 : index
    %61 = vector.load %arg7[%c0_41, %c352] : memref<16x384xf32, #tpu.memory_space<vmem>>, vector<16x32xf32>
    %cst_42 = arith.constant dense<0.000000e+00> : vector<16x16xf32>
    %62 = tpu.matmul %59, %60, %cst_42 {dimension_numbers = #tpu.dot_dimension_numbers<[1], [1], [0], [0], [0, 0, 1, 0], [], []>} : vector<16x32xf32>, vector<16x32xf32>, vector<16x16xf32> -> vector<16x16xf32>
    %cst_43 = arith.constant 0.176776692 : f32
    %63 = vector.broadcast %cst_43 : f32 to vector<16x16xf32>
    %64 = arith.mulf %62, %63 : vector<16x16xf32>
    %cst_44 = arith.constant dense<0xFF800000> : vector<16xf32>
    %65 = vector.multi_reduction <maximumf>, %64, %cst_44 [1] : vector<16x16xf32> to vector<16xf32>
    %66 = vector.shape_cast %65 : vector<16xf32> to vector<16x1xf32>
    %67 = vector.broadcast %66 : vector<16x1xf32> to vector<16x16xf32>
    %68 = arith.subf %64, %67 : vector<16x16xf32>
    %69 = math.exp %68 : vector<16x16xf32>
    %cst_45 = arith.constant dense<0.000000e+00> : vector<16xf32>
    %70 = vector.multi_reduction <add>, %69, %cst_45 [1] : vector<16x16xf32> to vector<16xf32>
    %71 = vector.shape_cast %70 : vector<16xf32> to vector<16x1xf32>
    %72 = vector.broadcast %71 : vector<16x1xf32> to vector<16x16xf32>
    %73 = arith.divf %69, %72 : vector<16x16xf32>
    %cst_46 = arith.constant dense<0.000000e+00> : vector<16x32xf32>
    %74 = tpu.matmul %73, %61, %cst_46 {dimension_numbers = #tpu.dot_dimension_numbers<[1], [0], [0], [1], [0, 0, 1, 1], [], []>} : vector<16x16xf32>, vector<16x32xf32>, vector<16x32xf32> -> vector<16x32xf32>
    %c0_47 = arith.constant 0 : index
    %c96_48 = arith.constant 96 : index
    %75 = vector.load %arg8[%c0_47, %c96_48] : memref<16x128xf32, #tpu.memory_space<vmem>>, vector<16x32xf32>
    tpu.vector_store %arg8[%c0_47, %c96_48], %74 {strides = array<i32>} : memref<16x128xf32, #tpu.memory_space<vmem>>, vector<16x32xf32>,
    %c0_49 = arith.constant 0 : index
    %c0_50 = arith.constant 0 : index
    %76 = vector.load %arg8[%c0_49, %c0_50] : memref<16x128xf32, #tpu.memory_space<vmem>>, vector<16x128xf32>
    %c0_51 = arith.constant 0 : index
    %c0_52 = arith.constant 0 : index
    %77 = vector.load %arg4[%c0_51, %c0_52] : memref<128x128xf32, #tpu.memory_space<vmem>>, vector<128x128xf32>
    %cst_53 = arith.constant dense<0.000000e+00> : vector<16x128xf32>
    %78 = tpu.matmul %76, %77, %cst_53 {dimension_numbers = #tpu.dot_dimension_numbers<[1], [0], [0], [1], [0, 0, 1, 1], [], []>} : vector<16x128xf32>, vector<128x128xf32>, vector<16x128xf32> -> vector<16x128xf32>
    %c0_54 = arith.constant 0 : index
    %c0_55 = arith.constant 0 : index
    %79 = vector.load %arg5[%c0_54, %c0_55] : memref<1x128xf32, #tpu.memory_space<vmem>>, vector<1x128xf32>
    %80 = vector.broadcast %79 : vector<1x128xf32> to vector<16x128xf32>
    %81 = arith.addf %78, %80 : vector<16x128xf32>
    %c0_56 = arith.constant 0 : index
    %c0_57 = arith.constant 0 : index
    %c0_58 = arith.constant 0 : index
    %82 = vector.load %arg6[%c0_56, %c0_57, %c0_58] : memref<1x16x128xf32, #tpu.memory_space<vmem>>, vector<1x16x128xf32>
    %83 = vector.shape_cast %82 : vector<1x16x128xf32> to vector<16x128xf32>
    %84 = vector.shape_cast %81 : vector<16x128xf32> to vector<1x16x128xf32>
    tpu.vector_store %arg6[%c0_56, %c0_57, %c0_58], %84 {strides = array<i32>} : memref<1x16x128xf32, #tpu.memory_space<vmem>>, vector<1x16x128xf32>,
    return
  }
  func.func @transform_0(%arg0: i32) -> (i32, i32, i32) {
    %c0_i32 = arith.constant 0 : i32
    %c0_i32_0 = arith.constant 0 : i32
    %c0_i32_1 = arith.constant 0 : i32
    return %arg0, %c0_i32, %c0_i32_0 : i32, i32, i32
  }
  func.func @transform_1(%arg0: i32) -> (i32, i32) {
    %c0_i32 = arith.constant 0 : i32
    %c0_i32_0 = arith.constant 0 : i32
    %c0_i32_1 = arith.constant 0 : i32
    return %c0_i32, %c0_i32_0 : i32, i32
  }
  func.func @transform_2(%arg0: i32) -> (i32, i32) {
    %c0_i32 = arith.constant 0 : i32
    %c0_i32_0 = arith.constant 0 : i32
    %c0_i32_1 = arith.constant 0 : i32
    return %c0_i32, %c0_i32_0 : i32, i32
  }
  func.func @transform_3(%arg0: i32) -> (i32, i32) {
    %c0_i32 = arith.constant 0 : i32
    %c0_i32_0 = arith.constant 0 : i32
    %c0_i32_1 = arith.constant 0 : i32
    return %c0_i32, %c0_i32_0 : i32, i32
  }
  func.func @transform_4(%arg0: i32) -> (i32, i32) {
    %c0_i32 = arith.constant 0 : i32
    %c0_i32_0 = arith.constant 0 : i32
    %c0_i32_1 = arith.constant 0 : i32
    return %c0_i32, %c0_i32_0 : i32, i32
  }
  func.func @transform_5(%arg0: i32) -> (i32, i32, i32) {
    %c0_i32 = arith.constant 0 : i32
    %c0_i32_0 = arith.constant 0 : i32
    %c0_i32_1 = arith.constant 0 : i32
    return %arg0, %c0_i32, %c0_i32_0 : i32, i32, i32
  }
}

</mosaic_0001>

<llo_original>
// kernel: _lambda_.1
$region0: #{_lambda_.1}
  #allocation0 [shape = 'u32[]', space=smem, size = 0x4, offset = 0x4, fixed_abs, tag = 'smem constant byte address 0x4 - core index']
  #allocation1 [shape = 'u32[144,128]{1,0:T(1,128)}', space=vmem, size = 0x12000, scoped, tag = 'internal scratch']
  #allocation2 [shape = 'f32[16,384]{1,0:T(8,128)}', space=vmem, size = 0x6000, scoped, tag = 'scratch operand']
  #allocation3 [shape = 'f32[16,128]{1,0:T(8,128)}', space=vmem, size = 0x2000, scoped, tag = 'scratch operand']
  %s0 = inlined_call_operand.hbm [shape: f32[2,16,128], index: 0, kind: input, shape index: {}]
  %s1 = inlined_call_operand.hbm [shape: f32[128,384], index: 1, kind: input, shape index: {}]
  %s2 = inlined_call_operand.vmem [shape: f32[1,384], index: 2, kind: input, shape index: {}]
  %s3 = inlined_call_operand.hbm [shape: f32[128,128], index: 3, kind: input, shape index: {}]
  %s4 = inlined_call_operand.vmem [shape: f32[1,128], index: 4, kind: input, shape index: {}]
  %s5 = inlined_call_operand.hbm [shape: f32[2,16,128], index: 5, kind: output, shape index: {}]
  %s6 = sld [smem:[#allocation0]]
  $region65: #{_lambda_.1} parent=0
    _
  %s8 = ssub.s32 1, %s6
  %s9 = scalar_select 0, %s8, %s6
  $region1: #{_lambda_.1} parent=0
    #allocation4 [shape = 'u8[16384]{0}', space=vmem, size = 0x4000, scoped, tag = 'input window, operand 0']
    #allocation5 [shape = 's32[2]{0}', space=sflag, size = 0x8, scoped, tag = 'scoped memory for _lambda_.1']
    #allocation6 [shape = 's32[2]{0}', space=sflag, size = 0x8, scoped, tag = 'scoped memory for _lambda_.1']
    #allocation7 [shape = 'u8[196608]{0}', space=vmem, size = 0x30000, scoped, tag = 'input window, operand 1, single buffered']
    #allocation8 [shape = 's32[1]{0}', space=sflag, size = 0x4, scoped, tag = 'scoped memory for _lambda_.1']
    #allocation9 [shape = 'u8[65536]{0}', space=vmem, size = 0x10000, scoped, tag = 'input window, operand 3, single buffered']
    #allocation10 [shape = 'u8[16384]{0}', space=vmem, size = 0x4000, scoped, tag = 'output window, operand 0']
    %10 = vsyncpa [#allocation5], 0
    %s11 = scalar_lea.sflag [#allocation5], 1
    %12 = vsyncpa %s11, 0
    %13 = vsyncpa [#allocation8], 0
    %14 = vsyncpa [#allocation6], 0
    %s15 = scalar_lea.sflag [#allocation6], 1
    %16 = vsyncpa %s15, 0
    loop: start=0, step=1, limit=4
    $region2: #{_lambda_.1} parent=1 // loop_pre_header
      _
    $region3: #{_lambda_.1} parent=1 // loop_header
      %s18 = sphi 0, %s22
      %p19 = scmp.ge.s32.totalorder %s18, 4
      %s28 = sphi 0, %s30
      %s31 = sphi 0, %s28
      %s32 = sphi 0, %s31
      %s48 = sphi 0, %s32
      %s52 = sphi 0, %s52
      %s54 = sphi 0, %s52
      %s55 = sphi 0, %s54
      %s69 = sphi 0, %s55
      %s73 = sphi 0, %s73
      %s75 = sphi 0, %s73
      %s76 = sphi 0, %s75
      %s90 = sphi 0, %s76
      %s94 = sphi 0, %s94
      %s96 = sphi 0, %s94
      %s97 = sphi 0, %s96
      %s111 = sphi 0, %s97
      %s115 = sphi 0, %s115
      %s117 = sphi 0, %s115
      %s118 = sphi 0, %s117
      %s132 = sphi 0, %s118
      %s138 = sphi 0, %s140
      %s141 = sphi 0, %s138
      %s142 = sphi 0, %s141
      %s158 = sphi 0, %s142
    $region4: #{_lambda_.1} parent=1 // loop_header_branch
      %21 = sbr.rel (%p19) target = $region8
    $region5: #{_lambda_.1} parent=1 // loop_body
      %s23 = ssub.s32 %s18, 1
      %s24 = ssub.s32 %s18, 2
      %s25 = sadd.s32 %s18, 1
      %s26 = ssub.s32 %s18, %s25
      %p27 = scmp.eq.s32.totalorder %s26, 0
      %s29 = sadd.s32 %s28, 1
      %s30 = scalar_select %p27, %s28, %s29
      %p33 = pneg %p27
      %p34 = scmp.eq.s32.totalorder %s18, 1
      %p35 = por %p33, %p34
      %p36 = scmp.ne.s32.totalorder %s28, %s31
      %p37 = scmp.eq.s32.totalorder %s18, 0
      %p38 = por %p36, %p37
      %p39 = scmp.ne.s32.totalorder %s28, %s31
      %p40 = scmp.eq.s32.totalorder %s23, 1
      %p41 = por %p39, %p40
      %p42 = scmp.ne.s32.totalorder %s31, %s32
      %p43 = scmp.eq.s32.totalorder %s23, 0
      %p44 = por %p42, %p43
      %p45 = scmp.ne.s32.totalorder %s31, %s32
      %p46 = scmp.eq.s32.totalorder %s24, 1
      %p47 = por %p45, %p46
      %p49 = scmp.ne.s32.totalorder %s32, %s48
      %p50 = scmp.eq.s32.totalorder %s24, 0
      %p51 = por %p49, %p50
      %s53 = sadd.s32 %s52, 1
      %p56 = scmp.eq.s32.totalorder %s18, 1
      %p57 = scmp.ne.s32.totalorder %s52, %s54
      %p58 = scmp.eq.s32.totalorder %s18, 0
      %p59 = por %p57, %p58
      %p60 = scmp.ne.s32.totalorder %s52, %s54
      %p61 = scmp.eq.s32.totalorder %s23, 1
      %p62 = por %p60, %p61
      %p63 = scmp.ne.s32.totalorder %s54, %s55
      %p64 = scmp.eq.s32.totalorder %s23, 0
      %p65 = por %p63, %p64
      %p66 = scmp.ne.s32.totalorder %s54, %s55
      %p67 = scmp.eq.s32.totalorder %s24, 1
      %p68 = por %p66, %p67
      %p70 = scmp.ne.s32.totalorder %s55, %s69
      %p71 = scmp.eq.s32.totalorder %s24, 0
      %p72 = por %p70, %p71
      %s74 = sadd.s32 %s73, 1
      %p77 = scmp.eq.s32.totalorder %s18, 1
      %p78 = scmp.ne.s32.totalorder %s73, %s75
      %p79 = scmp.eq.s32.totalorder %s18, 0
      %p80 = por %p78, %p79
      %p81 = scmp.ne.s32.totalorder %s73, %s75
      %p82 = scmp.eq.s32.totalorder %s23, 1
      %p83 = por %p81, %p82
      %p84 = scmp.ne.s32.totalorder %s75, %s76
      %p85 = scmp.eq.s32.totalorder %s23, 0
      %p86 = por %p84, %p85
      %p87 = scmp.ne.s32.totalorder %s75, %s76
      %p88 = scmp.eq.s32.totalorder %s24, 1
      %p89 = por %p87, %p88
      %p91 = scmp.ne.s32.totalorder %s76, %s90
      %p92 = scmp.eq.s32.totalorder %s24, 0
      %p93 = por %p91, %p92
      %s95 = sadd.s32 %s94, 1
      %p98 = scmp.eq.s32.totalorder %s18, 1
      %p99 = scmp.ne.s32.totalorder %s94, %s96
      %p100 = scmp.eq.s32.totalorder %s18, 0
      %p101 = por %p99, %p100
      %p102 = scmp.ne.s32.totalorder %s94, %s96
      %p103 = scmp.eq.s32.totalorder %s23, 1
      %p104 = por %p102, %p103
      %p105 = scmp.ne.s32.totalorder %s96, %s97
      %p106 = scmp.eq.s32.totalorder %s23, 0
      %p107 = por %p105, %p106
      %p108 = scmp.ne.s32.totalorder %s96, %s97
      %p109 = scmp.eq.s32.totalorder %s24, 1
      %p110 = por %p108, %p109
      %p112 = scmp.ne.s32.totalorder %s97, %s111
      %p113 = scmp.eq.s32.totalorder %s24, 0
      %p114 = por %p112, %p113
      %s116 = sadd.s32 %s115, 1
      %p119 = scmp.eq.s32.totalorder %s18, 1
      %p120 = scmp.ne.s32.totalorder %s115, %s117
      %p121 = scmp.eq.s32.totalorder %s18, 0
      %p122 = por %p120, %p121
      %p123 = scmp.ne.s32.totalorder %s115, %s117
      %p124 = scmp.eq.s32.totalorder %s23, 1
      %p125 = por %p123, %p124
      %p126 = scmp.ne.s32.totalorder %s117, %s118
      %p127 = scmp.eq.s32.totalorder %s23, 0
      %p128 = por %p126, %p127
      %p129 = scmp.ne.s32.totalorder %s117, %s118
      %p130 = scmp.eq.s32.totalorder %s24, 1
      %p131 = por %p129, %p130
      %p133 = scmp.ne.s32.totalorder %s118, %s132
      %p134 = scmp.eq.s32.totalorder %s24, 0
      %p135 = por %p133, %p134
      %s136 = ssub.s32 %s18, %s25
      %p137 = scmp.eq.s32.totalorder %s136, 0
      %s139 = sadd.s32 %s138, 1
      %s140 = scalar_select %p137, %s138, %s139
      %p143 = pneg %p137
      %p144 = scmp.eq.s32.totalorder %s18, 1
      %p145 = por %p143, %p144
      %p146 = scmp.ne.s32.totalorder %s138, %s141
      %p147 = scmp.eq.s32.totalorder %s18, 0
      %p148 = por %p146, %p147
      %p149 = scmp.ne.s32.totalorder %s138, %s141
      %p150 = scmp.eq.s32.totalorder %s23, 1
      %p151 = por %p149, %p150
      %p152 = scmp.ne.s32.totalorder %s141, %s142
      %p153 = scmp.eq.s32.totalorder %s23, 0
      %p154 = por %p152, %p153
      %p155 = scmp.ne.s32.totalorder %s141, %s142
      %p156 = scmp.eq.s32.totalorder %s24, 1
      %p157 = por %p155, %p156
      %p159 = scmp.ne.s32.totalorder %s142, %s158
      %p160 = scmp.eq.s32.totalorder %s24, 0
      %p161 = por %p159, %p160
      %p162 = scmp.le.s32.totalorder 1, %s18
      %p163 = scmp.lt.s32.totalorder %s18, 3
      %p164 = pnand %p162, %p163
      %p165 = pneg %p164
      // Predicated region
      $region9: #{_lambda_.1} parent=5 // pred_check
        _
      $region10: #{_lambda_.1} parent=5 // pred_check_branch
        %167 = sbr.rel (%p164) target = $region12
      $region11: #{_lambda_.1} parent=5 // pred_region
        %s168 = ssub.s32 %s18, 1
        // Predicated region
        $region13: #{_lambda_.1} parent=11 // pred_check
          %p169 = pneg %p65
        $region14: #{_lambda_.1} parent=11 // pred_check_branch
          %171 = sbr.rel (%p169) target = $region16
        $region15: #{_lambda_.1} parent=11 // pred_region
          %s173 = ssub.s32 6144, 6144
          %174 = vsyncadd [#allocation8], %s173
          %s175 = sshll.u32 [#allocation7], 4
          %s176 = int_to_ptr.vmem [resolvable:$true] %s175
          %181 = dma.hbm_to_vmem [thread:$0]  %s1, 6144, %s176, [#allocation8], 384, 384, 24
        $region16: #{_lambda_.1} parent=11 // pred_fallthru
          _
        // Predicated region
        $region17: #{_lambda_.1} parent=11 // pred_check
          %p182 = pneg %p86
        $region18: #{_lambda_.1} parent=11 // pred_check_branch
          %184 = sbr.rel (%p182) target = $region20
        $region19: #{_lambda_.1} parent=11 // pred_region
          _
        $region20: #{_lambda_.1} parent=11 // pred_fallthru
          _
        // Predicated region
        $region21: #{_lambda_.1} parent=11 // pred_check
          %p185 = pneg %p107
        $region22: #{_lambda_.1} parent=11 // pred_check_branch
          %187 = sbr.rel (%p185) target = $region24
        $region23: #{_lambda_.1} parent=11 // pred_region
          %s189 = ssub.s32 2048, 2048
          %190 = vsyncadd [#allocation8], %s189
          %s191 = sshll.u32 [#allocation9], 4
          %s192 = int_to_ptr.vmem [resolvable:$true] %s191
          %197 = dma.hbm_to_vmem [thread:$0]  %s3, 2048, %s192, [#allocation8], 128, 128, 8
        $region24: #{_lambda_.1} parent=11 // pred_fallthru
          _
        // Predicated region
        $region25: #{_lambda_.1} parent=11 // pred_check
          %p198 = pneg %p128
        $region26: #{_lambda_.1} parent=11 // pred_check_branch
          %200 = sbr.rel (%p198) target = $region28
        $region27: #{_lambda_.1} parent=11 // pred_region
          _
        $region28: #{_lambda_.1} parent=11 // pred_fallthru
          _
      $region12: #{_lambda_.1} parent=5 // pred_fallthru
        _
      %p201 = scmp.lt.s32.totalorder %s18, 2
      // Predicated region
      $region29: #{_lambda_.1} parent=5 // pred_check
        %p202 = pneg %p201
      $region30: #{_lambda_.1} parent=5 // pred_check_branch
        %204 = sbr.rel (%p202) target = $region32
      $region31: #{_lambda_.1} parent=5 // pred_region
        // Predicated region
        $region33: #{_lambda_.1} parent=31 // pred_check
          %p205 = pneg %p38
        $region34: #{_lambda_.1} parent=31 // pred_check_branch
          %207 = sbr.rel (%p205) target = $region36
        $region35: #{_lambda_.1} parent=31 // pred_region
          %s208 = sand.u32 %s28, 1
          %s209 = scalar_lea.sflag [#allocation5], %s208
          %s210 = sand.u32 %s28, 1
          %s211 = smul.addr %s210, 16
          %s212 = scalar_lea.vmem [#allocation4], %s211
          %s214 = ssub.s32 256, 256
          %215 = vsyncadd %s209, %s214
          %s216 = smul.addr %s18, 2
          %s217 = smul.addr %s216, 128
          %s218 = scalar_lea.hbm %s0, %s217
          %s219 = sshll.u32 %s212, 4
          %s220 = int_to_ptr.vmem [resolvable:$true] %s219
          %225 = dma.hbm_to_vmem [thread:$0]  %s218, 256, %s220, %s209, 128, 128, 8
        $region36: #{_lambda_.1} parent=31 // pred_fallthru
          _
      $region32: #{_lambda_.1} parent=5 // pred_fallthru
        _
      %p226 = scmp.le.s32.totalorder 1, %s18
      %p227 = scmp.lt.s32.totalorder %s18, 3
      %p228 = pnand %p226, %p227
      %p229 = pneg %p228
      // Predicated region
      $region37: #{_lambda_.1} parent=5 // pred_check
        _
      $region38: #{_lambda_.1} parent=5 // pred_check_branch
        %231 = sbr.rel (%p228) target = $region40
      $region39: #{_lambda_.1} parent=5 // pred_region
        %s232 = ssub.s32 %s18, 1
        %s233 = sand.u32 %s31, 1
        %s234 = scalar_lea.sflag [#allocation5], %s233
        %s235 = sand.u32 %s31, 1
        %s236 = smul.addr %s235, 16
        %s237 = scalar_lea.vmem [#allocation4], %s236
        // Predicated region
        $region41: #{_lambda_.1} parent=39 // pred_check
          %p238 = pneg %p44
        $region42: #{_lambda_.1} parent=39 // pred_check_branch
          %240 = sbr.rel (%p238) target = $region44
        $region43: #{_lambda_.1} parent=39 // pred_region
          %241 = dma.done %s234, 256
        $region44: #{_lambda_.1} parent=39 // pred_fallthru
          _
        // Predicated region
        $region45: #{_lambda_.1} parent=39 // pred_check
          %p242 = pneg %p65
        $region46: #{_lambda_.1} parent=39 // pred_check_branch
          %244 = sbr.rel (%p242) target = $region48
        $region47: #{_lambda_.1} parent=39 // pred_region
          %245 = dma.done [#allocation8], 6144
        $region48: #{_lambda_.1} parent=39 // pred_fallthru
          _
        // Predicated region
        $region49: #{_lambda_.1} parent=39 // pred_check
          %p246 = pneg %p107
        $region50: #{_lambda_.1} parent=39 // pred_check_branch
          %248 = sbr.rel (%p246) target = $region52
        $region51: #{_lambda_.1} parent=39 // pred_region
          %249 = dma.done [#allocation8], 2048
        $region52: #{_lambda_.1} parent=39 // pred_fallthru
          _
        %s250 = sand.u32 %s31, 1
        %s251 = scalar_lea.sflag [#allocation5], %s250
        %s252 = sand.u32 %s31, 1
        %s253 = smul.addr %s252, 16
        %s254 = scalar_lea.vmem [#allocation4], %s253
        %p255 = pneg %p44
        %p256 = pneg %p41
        %p257 = pneg %p65
        %p258 = pneg %p62
        %p259 = pneg %p86
        %p260 = pneg %p83
        %p261 = pneg %p107
        %p262 = pneg %p104
        %p263 = pneg %p128
        %p264 = pneg %p125
        %p265 = pneg %p154
        %p266 = pneg %p151
        %s267 = sand.u32 %s141, 1
        %s268 = scalar_lea.sflag [#allocation6], %s267
        %s269 = sand.u32 %s141, 1
        %s270 = smul.addr %s269, 16
        %s271 = scalar_lea.vmem [#allocation10], %s270
        %v272 = vld [vmem:[%s237] sm:$0xff]
        %v273 = vld [vmem:[%s237 + $0x8] sm:$0xff]
        %v274 = vld [vmem:[#allocation7] sm:$0xff]
        %v275 = vld [vmem:[#allocation7 + $0x8] sm:$0xff]
        %v276 = vld [vmem:[#allocation7 + $0x10] sm:$0xff]
        %v277 = vld [vmem:[#allocation7 + $0x18] sm:$0xff]
        %v278 = vld [vmem:[#allocation7 + $0x20] sm:$0xff]
        %v279 = vld [vmem:[#allocation7 + $0x28] sm:$0xff]
        %v280 = vld [vmem:[#allocation7 + $0x30] sm:$0xff]
        %v281 = vld [vmem:[#allocation7 + $0x38] sm:$0xff]
        %v282 = vld [vmem:[#allocation7 + $0x40] sm:$0xff]
        %v283 = vld [vmem:[#allocation7 + $0x48] sm:$0xff]
        %v284 = vld [vmem:[#allocation7 + $0x50] sm:$0xff]
        %v285 = vld [vmem:[#allocation7 + $0x58] sm:$0xff]
        %v286 = vld [vmem:[#allocation7 + $0x60] sm:$0xff]
        %v287 = vld [vmem:[#allocation7 + $0x68] sm:$0xff]
        %v288 = vld [vmem:[#allocation7 + $0x70] sm:$0xff]
        %v289 = vld [vmem:[#allocation7 + $0x78] sm:$0xff]
        %v290 = vld [vmem:[#allocation7 + $0x80] sm:$0xff]
        %v291 = vld [vmem:[#allocation7 + $0x88] sm:$0xff]
        %v292 = vld [vmem:[#allocation7 + $0x90] sm:$0xff]
        %v293 = vld [vmem:[#allocation7 + $0x98] sm:$0xff]
        %v294 = vld [vmem:[#allocation7 + $0xa0] sm:$0xff]
        %v295 = vld [vmem:[#allocation7 + $0xa8] sm:$0xff]
        %v296 = vld [vmem:[#allocation7 + $0xb0] sm:$0xff]
        %v297 = vld [vmem:[#allocation7 + $0xb8] sm:$0xff]
        %v298 = vld [vmem:[#allocation7 + $0xc0] sm:$0xff]
        %v299 = vld [vmem:[#allocation7 + $0xc8] sm:$0xff]
        %v300 = vld [vmem:[#allocation7 + $0xd0] sm:$0xff]
        %v301 = vld [vmem:[#allocation7 + $0xd8] sm:$0xff]
        %v302 = vld [vmem:[#allocation7 + $0xe0] sm:$0xff]
        %v303 = vld [vmem:[#allocation7 + $0xe8] sm:$0xff]
        %v304 = vld [vmem:[#allocation7 + $0xf0] sm:$0xff]
        %v305 = vld [vmem:[#allocation7 + $0xf8] sm:$0xff]
        %v306 = vld [vmem:[#allocation7 + $0x100] sm:$0xff]
        %v307 = vld [vmem:[#allocation7 + $0x108] sm:$0xff]
        %v308 = vld [vmem:[#allocation7 + $0x110] sm:$0xff]
        %v309 = vld [vmem:[#allocation7 + $0x118] sm:$0xff]
        %v310 = vld [vmem:[#allocation7 + $0x120] sm:$0xff]
        %v311 = vld [vmem:[#allocation7 + $0x128] sm:$0xff]
        %v312 = vld [vmem:[#allocation7 + $0x130] sm:$0xff]
        %v313 = vld [vmem:[#allocation7 + $0x138] sm:$0xff]
        %v314 = vld [vmem:[#allocation7 + $0x140] sm:$0xff]
        %v315 = vld [vmem:[#allocation7 + $0x148] sm:$0xff]
        %v316 = vld [vmem:[#allocation7 + $0x150] sm:$0xff]
        %v317 = vld [vmem:[#allocation7 + $0x158] sm:$0xff]
        %v318 = vld [vmem:[#allocation7 + $0x160] sm:$0xff]
        %v319 = vld [vmem:[#allocation7 + $0x168] sm:$0xff]
        %v320 = vld [vmem:[#allocation7 + $0x170] sm:$0xff]
        %v321 = vld [vmem:[#allocation7 + $0x178] sm:$0xff]
        %v322 = vld [vmem:[%s2] sm:$0x7]
        %v324 = vlaneseq
        %v325 = vshrl.u32 %v324, 7
        %v326 = vsub.s32 0, %v325
        %v327 = vrot.slane %v322, %v326
        %v328 = vlaneseq
        %v329 = vshrl.u32 %v328, 7
        %v330 = vsub.s32 1, %v329
        %v331 = vrot.slane %v322, %v330
        %v332 = vlaneseq
        %v333 = vshrl.u32 %v332, 7
        %v334 = vsub.s32 2, %v333
        %v335 = vrot.slane %v322, %v334
        %339 = vmatprep.subr.mxu0 %v275
        %340 = vmatpush1.msra.mxu0 %v274
        %341 = vmatprep.subr.mxu0 %v278
        %342 = vmatpush1.msra.mxu0 %v277
        %343 = vmatprep.subr.mxu0 %v281
        %344 = vmatpush1.msra.mxu0 %v280
        %345 = vmatprep.subr.mxu0 %v284
        %346 = vmatpush1.msra.mxu0 %v283
        %347 = vmatprep.subr.mxu0 %v287
        %348 = vmatpush1.msra.mxu0 %v286
        %349 = vmatprep.subr.mxu0 %v290
        %350 = vmatpush1.msra.mxu0 %v289
        %351 = vmatprep.subr.mxu0 %v293
        %352 = vmatpush1.msra.mxu0 %v292
        %353 = vmatprep.subr.mxu0 %v296
        %354 = vmatpush1.msra.mxu0 %v295
        %355 = vmatprep.subr.mxu0 %v299
        %356 = vmatpush1.msra.mxu0 %v298
        %357 = vmatprep.subr.mxu0 %v302
        %358 = vmatpush1.msra.mxu0 %v301
        %359 = vmatprep.subr.mxu0 %v305
        %360 = vmatpush1.msra.mxu0 %v304
        %361 = vmatprep.subr.mxu0 %v308
        %362 = vmatpush1.msra.mxu0 %v307
        %363 = vmatprep.subr.mxu0 %v311
        %364 = vmatpush1.msra.mxu0 %v310
        %365 = vmatprep.subr.mxu0 %v314
        %366 = vmatpush1.msra.mxu0 %v313
        %367 = vmatprep.subr.mxu0 %v317
        %368 = vmatpush1.msra.mxu0 %v316
        %369 = vmatprep.subr.mxu0 %v320
        %370 = vmatpush1.msra.mxu0 %v319
        %371 = vmatprep.subr.mxu0 0.0
        %372 = vmatpush1.msra.mxu0 0.0
        %373 = vmatprep.subr.mxu0 0.0
        %374 = vmatpush1.msra.mxu0 0.0
        %375 = vmatprep.subr.mxu0 0.0
        %376 = vmatpush1.msra.mxu0 0.0
        %377 = vmatprep.subr.mxu0 0.0
        %378 = vmatpush1.msra.mxu0 0.0
        %379 = vmatprep.subr.mxu0 0.0
        %380 = vmatpush1.msra.mxu0 0.0
        %381 = vmatprep.subr.mxu0 0.0
        %382 = vmatpush1.msra.mxu0 0.0
        %383 = vmatprep.subr.mxu0 0.0
        %384 = vmatpush1.msra.mxu0 0.0
        %385 = vmatprep.subr.mxu0 0.0
        %386 = vmatpush1.msra.mxu0 0.0
        %387 = vmatprep.subr.mxu0 0.0
        %388 = vmatpush1.msra.mxu0 0.0
        %389 = vmatprep.subr.mxu0 0.0
        %390 = vmatpush1.msra.mxu0 0.0
        %391 = vmatprep.subr.mxu0 0.0
        %392 = vmatpush1.msra.mxu0 0.0
        %393 = vmatprep.subr.mxu0 0.0
        %394 = vmatpush1.msra.mxu0 0.0
        %395 = vmatprep.subr.mxu0 0.0
        %396 = vmatpush1.msra.mxu0 0.0
        %397 = vmatprep.subr.mxu0 0.0
        %398 = vmatpush1.msra.mxu0 0.0
        %399 = vmatprep.subr.mxu0 0.0
        %400 = vmatpush1.msra.mxu0 0.0
        %401 = vmatprep.subr.mxu0 0.0
        %402 = vmatpush1.msra.mxu0 0.0
        %403 = vmatprep.mubr.f32.mxu0 0.0
        %404 = vmatmul.mubr.f32.gmra.mrb[0].mxu0 %v272
        %v405 = vpop.f32.mrb[0].mxu0
        %v406 = vadd.f32 %v327, %v405
        %v407 = vpop.f32.mrb[0].mxu0
        %v408 = vadd.f32 %v331, %v407
        %409 = vmatprep.mubr.f32.mxu0 0.0
        %410 = vmatmul.mubr.f32.gmra.mrb[0].mxu0 %v273
        %v411 = vpop.f32.mrb[0].mxu0
        %v412 = vadd.f32 %v327, %v411
        %v413 = vpop.f32.mrb[0].mxu0
        %v414 = vadd.f32 %v331, %v413
        %415 = vdwg.mxu0
        %416 = vmatprep.subr.mxu0 0.0
        %417 = vmatpush1.msra.mxu0 %v276
        %418 = vmatprep.subr.mxu0 0.0
        %419 = vmatpush1.msra.mxu0 %v279
        %420 = vmatprep.subr.mxu0 0.0
        %421 = vmatpush1.msra.mxu0 %v282
        %422 = vmatprep.subr.mxu0 0.0
        %423 = vmatpush1.msra.mxu0 %v285
        %424 = vmatprep.subr.mxu0 0.0
        %425 = vmatpush1.msra.mxu0 %v288
        %426 = vmatprep.subr.mxu0 0.0
        %427 = vmatpush1.msra.mxu0 %v291
        %428 = vmatprep.subr.mxu0 0.0
        %429 = vmatpush1.msra.mxu0 %v294
        %430 = vmatprep.subr.mxu0 0.0
        %431 = vmatpush1.msra.mxu0 %v297
        %432 = vmatprep.subr.mxu0 0.0
        %433 = vmatpush1.msra.mxu0 %v300
        %434 = vmatprep.subr.mxu0 0.0
        %435 = vmatpush1.msra.mxu0 %v303
        %436 = vmatprep.subr.mxu0 0.0
        %437 = vmatpush1.msra.mxu0 %v306
        %438 = vmatprep.subr.mxu0 0.0
        %439 = vmatpush1.msra.mxu0 %v309
        %440 = vmatprep.subr.mxu0 0.0
        %441 = vmatpush1.msra.mxu0 %v312
        %442 = vmatprep.subr.mxu0 0.0
        %443 = vmatpush1.msra.mxu0 %v315
        %444 = vmatprep.subr.mxu0 0.0
        %445 = vmatpush1.msra.mxu0 %v318
        %446 = vmatprep.subr.mxu0 0.0
        %447 = vmatpush1.msra.mxu0 %v321
        %448 = vmatprep.subr.mxu0 0.0
        %449 = vmatpush1.msra.mxu0 0.0
        %450 = vmatprep.subr.mxu0 0.0
        %451 = vmatpush1.msra.mxu0 0.0
        %452 = vmatprep.subr.mxu0 0.0
        %453 = vmatpush1.msra.mxu0 0.0
        %454 = vmatprep.subr.mxu0 0.0
        %455 = vmatpush1.msra.mxu0 0.0
        %456 = vmatprep.subr.mxu0 0.0
        %457 = vmatpush1.msra.mxu0 0.0
        %458 = vmatprep.subr.mxu0 0.0
        %459 = vmatpush1.msra.mxu0 0.0
        %460 = vmatprep.subr.mxu0 0.0
        %461 = vmatpush1.msra.mxu0 0.0
        %462 = vmatprep.subr.mxu0 0.0
        %463 = vmatpush1.msra.mxu0 0.0
        %464 = vmatprep.subr.mxu0 0.0
        %465 = vmatpush1.msra.mxu0 0.0
        %466 = vmatprep.subr.mxu0 0.0
        %467 = vmatpush1.msra.mxu0 0.0
        %468 = vmatprep.subr.mxu0 0.0
        %469 = vmatpush1.msra.mxu0 0.0
        %470 = vmatprep.subr.mxu0 0.0
        %471 = vmatpush1.msra.mxu0 0.0
        %472 = vmatprep.subr.mxu0 0.0
        %473 = vmatpush1.msra.mxu0 0.0
        %474 = vmatprep.subr.mxu0 0.0
        %475 = vmatpush1.msra.mxu0 0.0
        %476 = vmatprep.subr.mxu0 0.0
        %477 = vmatpush1.msra.mxu0 0.0
        %478 = vmatprep.subr.mxu0 0.0
        %479 = vmatpush1.msra.mxu0 0.0
        %480 = vmatprep.mubr.f32.mxu0 0.0
        %481 = vmatmul.mubr.f32.gmra.mrb[0].mxu0 %v272
        %v482 = vpop.f32.mrb[0].mxu0
        %v483 = vadd.f32 %v335, %v482
        %v484 = vpop.f32.mrb[0].mxu0
        %485 = vmatprep.mubr.f32.mxu0 0.0
        %486 = vmatmul.mubr.f32.gmra.mrb[0].mxu0 %v273
        %v487 = vpop.f32.mrb[0].mxu0
        %v488 = vadd.f32 %v335, %v487
        %v489 = vpop.f32.mrb[0].mxu0
        %490 = vdwg.mxu0
        %491 = vst [vmem:[#allocation2] sm:$0xff] %v406
        %492 = vst [vmem:[#allocation2 + $0x8] sm:$0xff] %v408
        %493 = vst [vmem:[#allocation2 + $0x10] sm:$0xff] %v483
        %494 = vst [vmem:[#allocation2 + $0x18] sm:$0xff] %v412
        %495 = vst [vmem:[#allocation2 + $0x20] sm:$0xff] %v414
        %496 = vst [vmem:[#allocation2 + $0x28] sm:$0xff] %v488
        %v497 = vld [vmem:[#allocation2] sm:$0xff]
        %v498 = vld [vmem:[#allocation2 + $0x18] sm:$0xff]
        %v499 = vld [vmem:[#allocation2 + $0x8] sm:$0xff]
        %v500 = vld [vmem:[#allocation2 + $0x20] sm:$0xff]
        %v501 = vld [vmem:[#allocation2 + $0x10] sm:$0xff]
        %v502 = vld [vmem:[#allocation2 + $0x28] sm:$0xff]
        %vm503 = vcmask 261120
        %v505 = vsel %vm503, %v497, 0
        %v508 = vsel %vm503, %v498, 0
        %v511 = vsel %vm503, %v499, 0
        %v514 = vsel %vm503, %v500, 0
        %516 = vmatprep.subr.mxu0 0.0
        %517 = vmatpush1.xpose.msra.mxu0 %v511
        %518 = vmatprep.subr.mxu0 0.0
        %519 = vmatpush1.xpose.msra.mxu0 %v514
        %520 = vmatprep.subr.mxu0 0.0
        %521 = vmatpush1.xpose.msra.mxu0 0.0
        %522 = vmatprep.subr.mxu0 0.0
        %523 = vmatpush1.xpose.msra.mxu0 0.0
        %524 = vmatprep.subr.mxu0 0.0
        %525 = vmatpush1.xpose.msra.mxu0 0.0
        %526 = vmatprep.subr.mxu0 0.0
        %527 = vmatpush1.xpose.msra.mxu0 0.0
        %528 = vmatprep.subr.mxu0 0.0
        %529 = vmatpush1.xpose.msra.mxu0 0.0
        %530 = vmatprep.subr.mxu0 0.0
        %531 = vmatpush1.xpose.msra.mxu0 0.0
        %532 = vmatprep.subr.mxu0 0.0
        %533 = vmatpush1.xpose.msra.mxu0 0.0
        %534 = vmatprep.subr.mxu0 0.0
        %535 = vmatpush1.xpose.msra.mxu0 0.0
        %536 = vmatprep.subr.mxu0 0.0
        %537 = vmatpush1.xpose.msra.mxu0 0.0
        %538 = vmatprep.subr.mxu0 0.0
        %539 = vmatpush1.xpose.msra.mxu0 0.0
        %540 = vmatprep.subr.mxu0 0.0
        %541 = vmatpush1.xpose.msra.mxu0 0.0
        %542 = vmatprep.subr.mxu0 0.0
        %543 = vmatpush1.xpose.msra.mxu0 0.0
        %544 = vmatprep.subr.mxu0 0.0
        %545 = vmatpush1.xpose.msra.mxu0 0.0
        %546 = vmatprep.subr.mxu0 0.0
        %547 = vmatpush1.xpose.msra.mxu0 0.0
        %548 = vmatprep.subr.mxu0 0.0
        %549 = vmatpush1.xpose.msra.mxu0 0.0
        %550 = vmatprep.subr.mxu0 0.0
        %551 = vmatpush1.xpose.msra.mxu0 0.0
        %552 = vmatprep.subr.mxu0 0.0
        %553 = vmatpush1.xpose.msra.mxu0 0.0
        %554 = vmatprep.subr.mxu0 0.0
        %555 = vmatpush1.xpose.msra.mxu0 0.0
        %556 = vmatprep.subr.mxu0 0.0
        %557 = vmatpush1.xpose.msra.mxu0 0.0
        %558 = vmatprep.subr.mxu0 0.0
        %559 = vmatpush1.xpose.msra.mxu0 0.0
        %560 = vmatprep.subr.mxu0 0.0
        %561 = vmatpush1.xpose.msra.mxu0 0.0
        %562 = vmatprep.subr.mxu0 0.0
        %563 = vmatpush1.xpose.msra.mxu0 0.0
        %564 = vmatprep.subr.mxu0 0.0
        %565 = vmatpush1.xpose.msra.mxu0 0.0
        %566 = vmatprep.subr.mxu0 0.0
        %567 = vmatpush1.xpose.msra.mxu0 0.0
        %568 = vmatprep.subr.mxu0 0.0
        %569 = vmatpush1.xpose.msra.mxu0 0.0
        %570 = vmatprep.subr.mxu0 0.0
        %571 = vmatpush1.xpose.msra.mxu0 0.0
        %572 = vmatprep.subr.mxu0 0.0
        %573 = vmatpush1.xpose.msra.mxu0 0.0
        %574 = vmatprep.subr.mxu0 0.0
        %575 = vmatpush1.xpose.msra.mxu0 0.0
        %576 = vmatprep.subr.mxu0 0.0
        %577 = vmatpush1.xpose.msra.mxu0 0.0
        %578 = vmatprep.subr.mxu0 0.0
        %579 = vmatpush1.xpose.msra.mxu0 0.0
        %580 = vmatprep.mubr.f32.mxu0 0.0
        %581 = vmatmul.mubr.f32.gmra.mrb[0].mxu0 %v505
        %v582 = vpop.f32.mrb[0].mxu0
        %v583 = vadd.f32 0.0, %v582
        %v584 = vpop.f32.mrb[0].mxu0
        %585 = vmatprep.mubr.f32.mxu0 0.0
        %586 = vmatmul.mubr.f32.gmra.mrb[0].mxu0 %v508
        %v587 = vpop.f32.mrb[0].mxu0
        %v588 = vadd.f32 0.0, %v587
        %v589 = vpop.f32.mrb[0].mxu0
        %590 = vdwg.mxu0
        %v591 = vmul.f32 %v583, 0.17677669
        %v592 = vmul.f32 %v588, 0.17677669
        %vm593 = vcmask 130048
        %v594 = vsel %vm593, %v591, -inf
        %595 = vmax.xlane.f32.xlu0 %v594
        %v596 = vpop.xlane.xlu0 %595
        %v597 = vsel %vm593, %v592, -inf
        %598 = vmax.xlane.f32.xlu0 %v597
        %v599 = vpop.xlane.xlu0 %598
        %v600 = vsub.f32 %v591, %v596
        %v601 = vsub.f32 %v592, %v599
        %v602 = vmul.f32 %v600, 1.442695
        %v603 = vpow.pop %v602
        %v604 = vmul.f32 %v601, 1.442695
        %v605 = vpow.pop %v604
        %v606 = vsel %vm593, %v603, 0.0
        %607 = vadd.xlane.f32.xlu0 %v606
        %v608 = vpop.xlane.xlu0 %607
        %v609 = vsel %vm593, %v605, 0.0
        %610 = vadd.xlane.f32.xlu0 %v609
        %v611 = vpop.xlane.xlu0 %610
        %v612 = vrcp.pop %v608
        %v613 = vmul.f32 %v603, %v612
        %v614 = vrcp.pop %v611
        %v615 = vmul.f32 %v605, %v614
        %v617 = vsel %vm593, %v613, 0
        %v620 = vsel %vm593, %v615, 0
        %622 = vmatprep.subr.mxu0 0.0
        %623 = vmatpush1.msra.mxu0 %v501
        %624 = vmatprep.subr.mxu0 0.0
        %625 = vmatpush1.msra.mxu0 %v502
        %626 = vmatprep.subr.mxu0 0.0
        %627 = vmatpush1.msra.mxu0 0.0
        %628 = vmatprep.subr.mxu0 0.0
        %629 = vmatpush1.msra.mxu0 0.0
        %630 = vmatprep.subr.mxu0 0.0
        %631 = vmatpush1.msra.mxu0 0.0
        %632 = vmatprep.subr.mxu0 0.0
        %633 = vmatpush1.msra.mxu0 0.0
        %634 = vmatprep.subr.mxu0 0.0
        %635 = vmatpush1.msra.mxu0 0.0
        %636 = vmatprep.subr.mxu0 0.0
        %637 = vmatpush1.msra.mxu0 0.0
        %638 = vmatprep.subr.mxu0 0.0
        %639 = vmatpush1.msra.mxu0 0.0
        %640 = vmatprep.subr.mxu0 0.0
        %641 = vmatpush1.msra.mxu0 0.0
        %642 = vmatprep.subr.mxu0 0.0
        %643 = vmatpush1.msra.mxu0 0.0
        %644 = vmatprep.subr.mxu0 0.0
        %645 = vmatpush1.msra.mxu0 0.0
        %646 = vmatprep.subr.mxu0 0.0
        %647 = vmatpush1.msra.mxu0 0.0
        %648 = vmatprep.subr.mxu0 0.0
        %649 = vmatpush1.msra.mxu0 0.0
        %650 = vmatprep.subr.mxu0 0.0
        %651 = vmatpush1.msra.mxu0 0.0
        %652 = vmatprep.subr.mxu0 0.0
        %653 = vmatpush1.msra.mxu0 0.0
        %654 = vmatprep.subr.mxu0 0.0
        %655 = vmatpush1.msra.mxu0 0.0
        %656 = vmatprep.subr.mxu0 0.0
        %657 = vmatpush1.msra.mxu0 0.0
        %658 = vmatprep.subr.mxu0 0.0
        %659 = vmatpush1.msra.mxu0 0.0
        %660 = vmatprep.subr.mxu0 0.0
        %661 = vmatpush1.msra.mxu0 0.0
        %662 = vmatprep.subr.mxu0 0.0
        %663 = vmatpush1.msra.mxu0 0.0
        %664 = vmatprep.subr.mxu0 0.0
        %665 = vmatpush1.msra.mxu0 0.0
        %666 = vmatprep.subr.mxu0 0.0
        %667 = vmatpush1.msra.mxu0 0.0
        %668 = vmatprep.subr.mxu0 0.0
        %669 = vmatpush1.msra.mxu0 0.0
        %670 = vmatprep.subr.mxu0 0.0
        %671 = vmatpush1.msra.mxu0 0.0
        %672 = vmatprep.subr.mxu0 0.0
        %673 = vmatpush1.msra.mxu0 0.0
        %674 = vmatprep.subr.mxu0 0.0
        %675 = vmatpush1.msra.mxu0 0.0
        %676 = vmatprep.subr.mxu0 0.0
        %677 = vmatpush1.msra.mxu0 0.0
        %678 = vmatprep.subr.mxu0 0.0
        %679 = vmatpush1.msra.mxu0 0.0
        %680 = vmatprep.subr.mxu0 0.0
        %681 = vmatpush1.msra.mxu0 0.0
        %682 = vmatprep.subr.mxu0 0.0
        %683 = vmatpush1.msra.mxu0 0.0
        %684 = vmatprep.subr.mxu0 0.0
        %685 = vmatpush1.msra.mxu0 0.0
        %686 = vmatprep.mubr.f32.mxu0 0.0
        %687 = vmatmul.mubr.f32.gmra.mrb[0].mxu0 %v617
        %v688 = vpop.f32.mrb[0].mxu0
        %v689 = vadd.f32 0.0, %v688
        %v690 = vpop.f32.mrb[0].mxu0
        %691 = vmatprep.mubr.f32.mxu0 0.0
        %692 = vmatmul.mubr.f32.gmra.mrb[0].mxu0 %v620
        %v693 = vpop.f32.mrb[0].mxu0
        %v694 = vadd.f32 0.0, %v693
        %v695 = vpop.f32.mrb[0].mxu0
        %696 = vdwg.mxu0
        %697 = vst.msk [vmem:[#allocation3] sm:$0xff] %vm503, %v689
        %698 = vst.msk [vmem:[#allocation3 + $0x8] sm:$0xff] %vm503, %v694
        %v699 = vld [vmem:[#allocation2] sm:$0xff]
        %v700 = vld [vmem:[#allocation2 + $0x18] sm:$0xff]
        %v701 = vld [vmem:[#allocation2 + $0x8] sm:$0xff]
        %v702 = vld [vmem:[#allocation2 + $0x20] sm:$0xff]
        %v703 = vld [vmem:[#allocation2 + $0x10] sm:$0xff]
        %v704 = vld [vmem:[#allocation2 + $0x28] sm:$0xff]
        %707 = vrot.lane.b32.xlu0 %v699, 96
        %v708 = vpop.permute.xlu0 %707
        %709 = vrot.lane.b32.xlu0 %v700, 96
        %v710 = vpop.permute.xlu0 %709
        %713 = vrot.lane.b32.xlu0 %v701, 96
        %v714 = vpop.permute.xlu0 %713
        %715 = vrot.lane.b32.xlu0 %v702, 96
        %v716 = vpop.permute.xlu0 %715
        %v717 = vsel %vm503, %v708, 0
        %v719 = vsel %vm503, %v710, 0
        %v721 = vsel %vm503, %v714, 0
        %v723 = vsel %vm503, %v716, 0
        %725 = vmatprep.subr.mxu0 0.0
        %726 = vmatpush1.xpose.msra.mxu0 %v721
        %727 = vmatprep.subr.mxu0 0.0
        %728 = vmatpush1.xpose.msra.mxu0 %v723
        %729 = vmatprep.subr.mxu0 0.0
        %730 = vmatpush1.xpose.msra.mxu0 0.0
        %731 = vmatprep.subr.mxu0 0.0
        %732 = vmatpush1.xpose.msra.mxu0 0.0
        %733 = vmatprep.subr.mxu0 0.0
        %734 = vmatpush1.xpose.msra.mxu0 0.0
        %735 = vmatprep.subr.mxu0 0.0
        %736 = vmatpush1.xpose.msra.mxu0 0.0
        %737 = vmatprep.subr.mxu0 0.0
        %738 = vmatpush1.xpose.msra.mxu0 0.0
        %739 = vmatprep.subr.mxu0 0.0
        %740 = vmatpush1.xpose.msra.mxu0 0.0
        %741 = vmatprep.subr.mxu0 0.0
        %742 = vmatpush1.xpose.msra.mxu0 0.0
        %743 = vmatprep.subr.mxu0 0.0
        %744 = vmatpush1.xpose.msra.mxu0 0.0
        %745 = vmatprep.subr.mxu0 0.0
        %746 = vmatpush1.xpose.msra.mxu0 0.0
        %747 = vmatprep.subr.mxu0 0.0
        %748 = vmatpush1.xpose.msra.mxu0 0.0
        %749 = vmatprep.subr.mxu0 0.0
        %750 = vmatpush1.xpose.msra.mxu0 0.0
        %751 = vmatprep.subr.mxu0 0.0
        %752 = vmatpush1.xpose.msra.mxu0 0.0
        %753 = vmatprep.subr.mxu0 0.0
        %754 = vmatpush1.xpose.msra.mxu0 0.0
        %755 = vmatprep.subr.mxu0 0.0
        %756 = vmatpush1.xpose.msra.mxu0 0.0
        %757 = vmatprep.subr.mxu0 0.0
        %758 = vmatpush1.xpose.msra.mxu0 0.0
        %759 = vmatprep.subr.mxu0 0.0
        %760 = vmatpush1.xpose.msra.mxu0 0.0
        %761 = vmatprep.subr.mxu0 0.0
        %762 = vmatpush1.xpose.msra.mxu0 0.0
        %763 = vmatprep.subr.mxu0 0.0
        %764 = vmatpush1.xpose.msra.mxu0 0.0
        %765 = vmatprep.subr.mxu0 0.0
        %766 = vmatpush1.xpose.msra.mxu0 0.0
        %767 = vmatprep.subr.mxu0 0.0
        %768 = vmatpush1.xpose.msra.mxu0 0.0
        %769 = vmatprep.subr.mxu0 0.0
        %770 = vmatpush1.xpose.msra.mxu0 0.0
        %771 = vmatprep.subr.mxu0 0.0
        %772 = vmatpush1.xpose.msra.mxu0 0.0
        %773 = vmatprep.subr.mxu0 0.0
        %774 = vmatpush1.xpose.msra.mxu0 0.0
        %775 = vmatprep.subr.mxu0 0.0
        %776 = vmatpush1.xpose.msra.mxu0 0.0
        %777 = vmatprep.subr.mxu0 0.0
        %778 = vmatpush1.xpose.msra.mxu0 0.0
        %779 = vmatprep.subr.mxu0 0.0
        %780 = vmatpush1.xpose.msra.mxu0 0.0
        %781 = vmatprep.subr.mxu0 0.0
        %782 = vmatpush1.xpose.msra.mxu0 0.0
        %783 = vmatprep.subr.mxu0 0.0
        %784 = vmatpush1.xpose.msra.mxu0 0.0
        %785 = vmatprep.subr.mxu0 0.0
        %786 = vmatpush1.xpose.msra.mxu0 0.0
        %787 = vmatprep.subr.mxu0 0.0
        %788 = vmatpush1.xpose.msra.mxu0 0.0
        %789 = vmatprep.mubr.f32.mxu0 0.0
        %790 = vmatmul.mubr.f32.gmra.mrb[0].mxu0 %v717
        %v791 = vpop.f32.mrb[0].mxu0
        %v792 = vadd.f32 0.0, %v791
        %v793 = vpop.f32.mrb[0].mxu0
        %794 = vmatprep.mubr.f32.mxu0 0.0
        %795 = vmatmul.mubr.f32.gmra.mrb[0].mxu0 %v719
        %v796 = vpop.f32.mrb[0].mxu0
        %v797 = vadd.f32 0.0, %v796
        %v798 = vpop.f32.mrb[0].mxu0
        %799 = vdwg.mxu0
        %v800 = vmul.f32 %v792, 0.17677669
        %v801 = vmul.f32 %v797, 0.17677669
        %v802 = vsel %vm593, %v800, -inf
        %803 = vmax.xlane.f32.xlu0 %v802
        %v804 = vpop.xlane.xlu0 %803
        %v805 = vsel %vm593, %v801, -inf
        %806 = vmax.xlane.f32.xlu0 %v805
        %v807 = vpop.xlane.xlu0 %806
        %v808 = vsub.f32 %v800, %v804
        %v809 = vsub.f32 %v801, %v807
        %v810 = vmul.f32 %v808, 1.442695
        %v811 = vpow.pop %v810
        %v812 = vmul.f32 %v809, 1.442695
        %v813 = vpow.pop %v812
        %v814 = vsel %vm593, %v811, 0.0
        %815 = vadd.xlane.f32.xlu0 %v814
        %v816 = vpop.xlane.xlu0 %815
        %v817 = vsel %vm593, %v813, 0.0
        %818 = vadd.xlane.f32.xlu0 %v817
        %v819 = vpop.xlane.xlu0 %818
        %v820 = vrcp.pop %v816
        %v821 = vmul.f32 %v811, %v820
        %v822 = vrcp.pop %v819
        %v823 = vmul.f32 %v813, %v822
        %826 = vrot.lane.b32.xlu0 %v703, 96
        %v827 = vpop.permute.xlu0 %826
        %828 = vrot.lane.b32.xlu0 %v704, 96
        %v829 = vpop.permute.xlu0 %828
        %v833 = vsel %vm593, %v821, 0
        %v836 = vsel %vm593, %v823, 0
        %838 = vmatprep.subr.mxu0 0.0
        %839 = vmatpush1.msra.mxu0 %v827
        %840 = vmatprep.subr.mxu0 0.0
        %841 = vmatpush1.msra.mxu0 %v829
        %842 = vmatprep.subr.mxu0 0.0
        %843 = vmatpush1.msra.mxu0 0.0
        %844 = vmatprep.subr.mxu0 0.0
        %845 = vmatpush1.msra.mxu0 0.0
        %846 = vmatprep.subr.mxu0 0.0
        %847 = vmatpush1.msra.mxu0 0.0
        %848 = vmatprep.subr.mxu0 0.0
        %849 = vmatpush1.msra.mxu0 0.0
        %850 = vmatprep.subr.mxu0 0.0
        %851 = vmatpush1.msra.mxu0 0.0
        %852 = vmatprep.subr.mxu0 0.0
        %853 = vmatpush1.msra.mxu0 0.0
        %854 = vmatprep.subr.mxu0 0.0
        %855 = vmatpush1.msra.mxu0 0.0
        %856 = vmatprep.subr.mxu0 0.0
        %857 = vmatpush1.msra.mxu0 0.0
        %858 = vmatprep.subr.mxu0 0.0
        %859 = vmatpush1.msra.mxu0 0.0
        %860 = vmatprep.subr.mxu0 0.0
        %861 = vmatpush1.msra.mxu0 0.0
        %862 = vmatprep.subr.mxu0 0.0
        %863 = vmatpush1.msra.mxu0 0.0
        %864 = vmatprep.subr.mxu0 0.0
        %865 = vmatpush1.msra.mxu0 0.0
        %866 = vmatprep.subr.mxu0 0.0
        %867 = vmatpush1.msra.mxu0 0.0
        %868 = vmatprep.subr.mxu0 0.0
        %869 = vmatpush1.msra.mxu0 0.0
        %870 = vmatprep.subr.mxu0 0.0
        %871 = vmatpush1.msra.mxu0 0.0
        %872 = vmatprep.subr.mxu0 0.0
        %873 = vmatpush1.msra.mxu0 0.0
        %874 = vmatprep.subr.mxu0 0.0
        %875 = vmatpush1.msra.mxu0 0.0
        %876 = vmatprep.subr.mxu0 0.0
        %877 = vmatpush1.msra.mxu0 0.0
        %878 = vmatprep.subr.mxu0 0.0
        %879 = vmatpush1.msra.mxu0 0.0
        %880 = vmatprep.subr.mxu0 0.0
        %881 = vmatpush1.msra.mxu0 0.0
        %882 = vmatprep.subr.mxu0 0.0
        %883 = vmatpush1.msra.mxu0 0.0
        %884 = vmatprep.subr.mxu0 0.0
        %885 = vmatpush1.msra.mxu0 0.0
        %886 = vmatprep.subr.mxu0 0.0
        %887 = vmatpush1.msra.mxu0 0.0
        %888 = vmatprep.subr.mxu0 0.0
        %889 = vmatpush1.msra.mxu0 0.0
        %890 = vmatprep.subr.mxu0 0.0
        %891 = vmatpush1.msra.mxu0 0.0
        %892 = vmatprep.subr.mxu0 0.0
        %893 = vmatpush1.msra.mxu0 0.0
        %894 = vmatprep.subr.mxu0 0.0
        %895 = vmatpush1.msra.mxu0 0.0
        %896 = vmatprep.subr.mxu0 0.0
        %897 = vmatpush1.msra.mxu0 0.0
        %898 = vmatprep.subr.mxu0 0.0
        %899 = vmatpush1.msra.mxu0 0.0
        %900 = vmatprep.subr.mxu0 0.0
        %901 = vmatpush1.msra.mxu0 0.0
        %902 = vmatprep.mubr.f32.mxu0 0.0
        %903 = vmatmul.mubr.f32.gmra.mrb[0].mxu0 %v833
        %v904 = vpop.f32.mrb[0].mxu0
        %v905 = vadd.f32 0.0, %v904
        %v906 = vpop.f32.mrb[0].mxu0
        %907 = vmatprep.mubr.f32.mxu0 0.0
        %908 = vmatmul.mubr.f32.gmra.mrb[0].mxu0 %v836
        %v909 = vpop.f32.mrb[0].mxu0
        %v910 = vadd.f32 0.0, %v909
        %v911 = vpop.f32.mrb[0].mxu0
        %912 = vdwg.mxu0
        %915 = vrot.lane.b32.xlu0 %v905, 32
        %v916 = vpop.permute.xlu0 %915
        %917 = vrot.lane.b32.xlu0 %v910, 32
        %v918 = vpop.permute.xlu0 %917
        %vm921 = vcmask 523520
        %922 = vst.msk [vmem:[#allocation3] sm:$0xff] %vm921, %v916
        %923 = vst.msk [vmem:[#allocation3 + $0x8] sm:$0xff] %vm921, %v918
        %v924 = vld [vmem:[#allocation2] sm:$0xff]
        %v925 = vld [vmem:[#allocation2 + $0x18] sm:$0xff]
        %v926 = vld [vmem:[#allocation2 + $0x8] sm:$0xff]
        %v927 = vld [vmem:[#allocation2 + $0x20] sm:$0xff]
        %v928 = vld [vmem:[#allocation2 + $0x10] sm:$0xff]
        %v929 = vld [vmem:[#allocation2 + $0x28] sm:$0xff]
        %932 = vrot.lane.b32.xlu0 %v924, 64
        %v933 = vpop.permute.xlu0 %932
        %934 = vrot.lane.b32.xlu0 %v925, 64
        %v935 = vpop.permute.xlu0 %934
        %938 = vrot.lane.b32.xlu0 %v926, 64
        %v939 = vpop.permute.xlu0 %938
        %940 = vrot.lane.b32.xlu0 %v927, 64
        %v941 = vpop.permute.xlu0 %940
        %v942 = vsel %vm503, %v933, 0
        %v944 = vsel %vm503, %v935, 0
        %v946 = vsel %vm503, %v939, 0
        %v948 = vsel %vm503, %v941, 0
        %950 = vmatprep.subr.mxu0 0.0
        %951 = vmatpush1.xpose.msra.mxu0 %v946
        %952 = vmatprep.subr.mxu0 0.0
        %953 = vmatpush1.xpose.msra.mxu0 %v948
        %954 = vmatprep.subr.mxu0 0.0
        %955 = vmatpush1.xpose.msra.mxu0 0.0
        %956 = vmatprep.subr.mxu0 0.0
        %957 = vmatpush1.xpose.msra.mxu0 0.0
        %958 = vmatprep.subr.mxu0 0.0
        %959 = vmatpush1.xpose.msra.mxu0 0.0
        %960 = vmatprep.subr.mxu0 0.0
        %961 = vmatpush1.xpose.msra.mxu0 0.0
        %962 = vmatprep.subr.mxu0 0.0
        %963 = vmatpush1.xpose.msra.mxu0 0.0
        %964 = vmatprep.subr.mxu0 0.0
        %965 = vmatpush1.xpose.msra.mxu0 0.0
        %966 = vmatprep.subr.mxu0 0.0
        %967 = vmatpush1.xpose.msra.mxu0 0.0
        %968 = vmatprep.subr.mxu0 0.0
        %969 = vmatpush1.xpose.msra.mxu0 0.0
        %970 = vmatprep.subr.mxu0 0.0
        %971 = vmatpush1.xpose.msra.mxu0 0.0
        %972 = vmatprep.subr.mxu0 0.0
        %973 = vmatpush1.xpose.msra.mxu0 0.0
        %974 = vmatprep.subr.mxu0 0.0
        %975 = vmatpush1.xpose.msra.mxu0 0.0
        %976 = vmatprep.subr.mxu0 0.0
        %977 = vmatpush1.xpose.msra.mxu0 0.0
        %978 = vmatprep.subr.mxu0 0.0
        %979 = vmatpush1.xpose.msra.mxu0 0.0
        %980 = vmatprep.subr.mxu0 0.0
        %981 = vmatpush1.xpose.msra.mxu0 0.0
        %982 = vmatprep.subr.mxu0 0.0
        %983 = vmatpush1.xpose.msra.mxu0 0.0
        %984 = vmatprep.subr.mxu0 0.0
        %985 = vmatpush1.xpose.msra.mxu0 0.0
        %986 = vmatprep.subr.mxu0 0.0
        %987 = vmatpush1.xpose.msra.mxu0 0.0
        %988 = vmatprep.subr.mxu0 0.0
        %989 = vmatpush1.xpose.msra.mxu0 0.0
        %990 = vmatprep.subr.mxu0 0.0
        %991 = vmatpush1.xpose.msra.mxu0 0.0
        %992 = vmatprep.subr.mxu0 0.0
        %993 = vmatpush1.xpose.msra.mxu0 0.0
        %994 = vmatprep.subr.mxu0 0.0
        %995 = vmatpush1.xpose.msra.mxu0 0.0
        %996 = vmatprep.subr.mxu0 0.0
        %997 = vmatpush1.xpose.msra.mxu0 0.0
        %998 = vmatprep.subr.mxu0 0.0
        %999 = vmatpush1.xpose.msra.mxu0 0.0
        %1000 = vmatprep.subr.mxu0 0.0
        %1001 = vmatpush1.xpose.msra.mxu0 0.0
        %1002 = vmatprep.subr.mxu0 0.0
        %1003 = vmatpush1.xpose.msra.mxu0 0.0
        %1004 = vmatprep.subr.mxu0 0.0
        %1005 = vmatpush1.xpose.msra.mxu0 0.0
        %1006 = vmatprep.subr.mxu0 0.0
        %1007 = vmatpush1.xpose.msra.mxu0 0.0
        %1008 = vmatprep.subr.mxu0 0.0
        %1009 = vmatpush1.xpose.msra.mxu0 0.0
        %1010 = vmatprep.subr.mxu0 0.0
        %1011 = vmatpush1.xpose.msra.mxu0 0.0
        %1012 = vmatprep.subr.mxu0 0.0
        %1013 = vmatpush1.xpose.msra.mxu0 0.0
        %1014 = vmatprep.mubr.f32.mxu0 0.0
        %1015 = vmatmul.mubr.f32.gmra.mrb[0].mxu0 %v942
        %v1016 = vpop.f32.mrb[0].mxu0
        %v1017 = vadd.f32 0.0, %v1016
        %v1018 = vpop.f32.mrb[0].mxu0
        %1019 = vmatprep.mubr.f32.mxu0 0.0
        %1020 = vmatmul.mubr.f32.gmra.mrb[0].mxu0 %v944
        %v1021 = vpop.f32.mrb[0].mxu0
        %v1022 = vadd.f32 0.0, %v1021
        %v1023 = vpop.f32.mrb[0].mxu0
        %1024 = vdwg.mxu0
        %v1025 = vmul.f32 %v1017, 0.17677669
        %v1026 = vmul.f32 %v1022, 0.17677669
        %v1027 = vsel %vm593, %v1025, -inf
        %1028 = vmax.xlane.f32.xlu0 %v1027
        %v1029 = vpop.xlane.xlu0 %1028
        %v1030 = vsel %vm593, %v1026, -inf
        %1031 = vmax.xlane.f32.xlu0 %v1030
        %v1032 = vpop.xlane.xlu0 %1031
        %v1033 = vsub.f32 %v1025, %v1029
        %v1034 = vsub.f32 %v1026, %v1032
        %v1035 = vmul.f32 %v1033, 1.442695
        %v1036 = vpow.pop %v1035
        %v1037 = vmul.f32 %v1034, 1.442695
        %v1038 = vpow.pop %v1037
        %v1039 = vsel %vm593, %v1036, 0.0
        %1040 = vadd.xlane.f32.xlu0 %v1039
        %v1041 = vpop.xlane.xlu0 %1040
        %v1042 = vsel %vm593, %v1038, 0.0
        %1043 = vadd.xlane.f32.xlu0 %v1042
        %v1044 = vpop.xlane.xlu0 %1043
        %v1045 = vrcp.pop %v1041
        %v1046 = vmul.f32 %v1036, %v1045
        %v1047 = vrcp.pop %v1044
        %v1048 = vmul.f32 %v1038, %v1047
        %1051 = vrot.lane.b32.xlu0 %v928, 64
        %v1052 = vpop.permute.xlu0 %1051
        %1053 = vrot.lane.b32.xlu0 %v929, 64
        %v1054 = vpop.permute.xlu0 %1053
        %v1058 = vsel %vm593, %v1046, 0
        %v1061 = vsel %vm593, %v1048, 0
        %1063 = vmatprep.subr.mxu0 0.0
        %1064 = vmatpush1.msra.mxu0 %v1052
        %1065 = vmatprep.subr.mxu0 0.0
        %1066 = vmatpush1.msra.mxu0 %v1054
        %1067 = vmatprep.subr.mxu0 0.0
        %1068 = vmatpush1.msra.mxu0 0.0
        %1069 = vmatprep.subr.mxu0 0.0
        %1070 = vmatpush1.msra.mxu0 0.0
        %1071 = vmatprep.subr.mxu0 0.0
        %1072 = vmatpush1.msra.mxu0 0.0
        %1073 = vmatprep.subr.mxu0 0.0
        %1074 = vmatpush1.msra.mxu0 0.0
        %1075 = vmatprep.subr.mxu0 0.0
        %1076 = vmatpush1.msra.mxu0 0.0
        %1077 = vmatprep.subr.mxu0 0.0
        %1078 = vmatpush1.msra.mxu0 0.0
        %1079 = vmatprep.subr.mxu0 0.0
        %1080 = vmatpush1.msra.mxu0 0.0
        %1081 = vmatprep.subr.mxu0 0.0
        %1082 = vmatpush1.msra.mxu0 0.0
        %1083 = vmatprep.subr.mxu0 0.0
        %1084 = vmatpush1.msra.mxu0 0.0
        %1085 = vmatprep.subr.mxu0 0.0
        %1086 = vmatpush1.msra.mxu0 0.0
        %1087 = vmatprep.subr.mxu0 0.0
        %1088 = vmatpush1.msra.mxu0 0.0
        %1089 = vmatprep.subr.mxu0 0.0
        %1090 = vmatpush1.msra.mxu0 0.0
        %1091 = vmatprep.subr.mxu0 0.0
        %1092 = vmatpush1.msra.mxu0 0.0
        %1093 = vmatprep.subr.mxu0 0.0
        %1094 = vmatpush1.msra.mxu0 0.0
        %1095 = vmatprep.subr.mxu0 0.0
        %1096 = vmatpush1.msra.mxu0 0.0
        %1097 = vmatprep.subr.mxu0 0.0
        %1098 = vmatpush1.msra.mxu0 0.0
        %1099 = vmatprep.subr.mxu0 0.0
        %1100 = vmatpush1.msra.mxu0 0.0
        %1101 = vmatprep.subr.mxu0 0.0
        %1102 = vmatpush1.msra.mxu0 0.0
        %1103 = vmatprep.subr.mxu0 0.0
        %1104 = vmatpush1.msra.mxu0 0.0
        %1105 = vmatprep.subr.mxu0 0.0
        %1106 = vmatpush1.msra.mxu0 0.0
        %1107 = vmatprep.subr.mxu0 0.0
        %1108 = vmatpush1.msra.mxu0 0.0
        %1109 = vmatprep.subr.mxu0 0.0
        %1110 = vmatpush1.msra.mxu0 0.0
        %1111 = vmatprep.subr.mxu0 0.0
        %1112 = vmatpush1.msra.mxu0 0.0
        %1113 = vmatprep.subr.mxu0 0.0
        %1114 = vmatpush1.msra.mxu0 0.0
        %1115 = vmatprep.subr.mxu0 0.0
        %1116 = vmatpush1.msra.mxu0 0.0
        %1117 = vmatprep.subr.mxu0 0.0
        %1118 = vmatpush1.msra.mxu0 0.0
        %1119 = vmatprep.subr.mxu0 0.0
        %1120 = vmatpush1.msra.mxu0 0.0
        %1121 = vmatprep.subr.mxu0 0.0
        %1122 = vmatpush1.msra.mxu0 0.0
        %1123 = vmatprep.subr.mxu0 0.0
        %1124 = vmatpush1.msra.mxu0 0.0
        %1125 = vmatprep.subr.mxu0 0.0
        %1126 = vmatpush1.msra.mxu0 0.0
        %1127 = vmatprep.mubr.f32.mxu0 0.0
        %1128 = vmatmul.mubr.f32.gmra.mrb[0].mxu0 %v1058
        %v1129 = vpop.f32.mrb[0].mxu0
        %v1130 = vadd.f32 0.0, %v1129
        %v1131 = vpop.f32.mrb[0].mxu0
        %1132 = vmatprep.mubr.f32.mxu0 0.0
        %1133 = vmatmul.mubr.f32.gmra.mrb[0].mxu0 %v1061
        %v1134 = vpop.f32.mrb[0].mxu0
        %v1135 = vadd.f32 0.0, %v1134
        %v1136 = vpop.f32.mrb[0].mxu0
        %1137 = vdwg.mxu0
        %1140 = vrot.lane.b32.xlu0 %v1130, 64
        %v1141 = vpop.permute.xlu0 %1140
        %1142 = vrot.lane.b32.xlu0 %v1135, 64
        %v1143 = vpop.permute.xlu0 %1142
        %vm1146 = vcmask 785920
        %1147 = vst.msk [vmem:[#allocation3] sm:$0xff] %vm1146, %v1141
        %1148 = vst.msk [vmem:[#allocation3 + $0x8] sm:$0xff] %vm1146, %v1143
        %v1149 = vld [vmem:[#allocation2] sm:$0xff]
        %v1150 = vld [vmem:[#allocation2 + $0x18] sm:$0xff]
        %v1151 = vld [vmem:[#allocation2 + $0x8] sm:$0xff]
        %v1152 = vld [vmem:[#allocation2 + $0x20] sm:$0xff]
        %v1153 = vld [vmem:[#allocation2 + $0x10] sm:$0xff]
        %v1154 = vld [vmem:[#allocation2 + $0x28] sm:$0xff]
        %1157 = vrot.lane.b32.xlu0 %v1149, 32
        %v1158 = vpop.permute.xlu0 %1157
        %1159 = vrot.lane.b32.xlu0 %v1150, 32
        %v1160 = vpop.permute.xlu0 %1159
        %1163 = vrot.lane.b32.xlu0 %v1151, 32
        %v1164 = vpop.permute.xlu0 %1163
        %1165 = vrot.lane.b32.xlu0 %v1152, 32
        %v1166 = vpop.permute.xlu0 %1165
        %v1167 = vsel %vm503, %v1158, 0
        %v1169 = vsel %vm503, %v1160, 0
        %v1171 = vsel %vm503, %v1164, 0
        %v1173 = vsel %vm503, %v1166, 0
        %1175 = vmatprep.subr.mxu0 0.0
        %1176 = vmatpush1.xpose.msra.mxu0 %v1171
        %1177 = vmatprep.subr.mxu0 0.0
        %1178 = vmatpush1.xpose.msra.mxu0 %v1173
        %1179 = vmatprep.subr.mxu0 0.0
        %1180 = vmatpush1.xpose.msra.mxu0 0.0
        %1181 = vmatprep.subr.mxu0 0.0
        %1182 = vmatpush1.xpose.msra.mxu0 0.0
        %1183 = vmatprep.subr.mxu0 0.0
        %1184 = vmatpush1.xpose.msra.mxu0 0.0
        %1185 = vmatprep.subr.mxu0 0.0
        %1186 = vmatpush1.xpose.msra.mxu0 0.0
        %1187 = vmatprep.subr.mxu0 0.0
        %1188 = vmatpush1.xpose.msra.mxu0 0.0
        %1189 = vmatprep.subr.mxu0 0.0
        %1190 = vmatpush1.xpose.msra.mxu0 0.0
        %1191 = vmatprep.subr.mxu0 0.0
        %1192 = vmatpush1.xpose.msra.mxu0 0.0
        %1193 = vmatprep.subr.mxu0 0.0
        %1194 = vmatpush1.xpose.msra.mxu0 0.0
        %1195 = vmatprep.subr.mxu0 0.0
        %1196 = vmatpush1.xpose.msra.mxu0 0.0
        %1197 = vmatprep.subr.mxu0 0.0
        %1198 = vmatpush1.xpose.msra.mxu0 0.0
        %1199 = vmatprep.subr.mxu0 0.0
        %1200 = vmatpush1.xpose.msra.mxu0 0.0
        %1201 = vmatprep.subr.mxu0 0.0
        %1202 = vmatpush1.xpose.msra.mxu0 0.0
        %1203 = vmatprep.subr.mxu0 0.0
        %1204 = vmatpush1.xpose.msra.mxu0 0.0
        %1205 = vmatprep.subr.mxu0 0.0
        %1206 = vmatpush1.xpose.msra.mxu0 0.0
        %1207 = vmatprep.subr.mxu0 0.0
        %1208 = vmatpush1.xpose.msra.mxu0 0.0
        %1209 = vmatprep.subr.mxu0 0.0
        %1210 = vmatpush1.xpose.msra.mxu0 0.0
        %1211 = vmatprep.subr.mxu0 0.0
        %1212 = vmatpush1.xpose.msra.mxu0 0.0
        %1213 = vmatprep.subr.mxu0 0.0
        %1214 = vmatpush1.xpose.msra.mxu0 0.0
        %1215 = vmatprep.subr.mxu0 0.0
        %1216 = vmatpush1.xpose.msra.mxu0 0.0
        %1217 = vmatprep.subr.mxu0 0.0
        %1218 = vmatpush1.xpose.msra.mxu0 0.0
        %1219 = vmatprep.subr.mxu0 0.0
        %1220 = vmatpush1.xpose.msra.mxu0 0.0
        %1221 = vmatprep.subr.mxu0 0.0
        %1222 = vmatpush1.xpose.msra.mxu0 0.0
        %1223 = vmatprep.subr.mxu0 0.0
        %1224 = vmatpush1.xpose.msra.mxu0 0.0
        %1225 = vmatprep.subr.mxu0 0.0
        %1226 = vmatpush1.xpose.msra.mxu0 0.0
        %1227 = vmatprep.subr.mxu0 0.0
        %1228 = vmatpush1.xpose.msra.mxu0 0.0
        %1229 = vmatprep.subr.mxu0 0.0
        %1230 = vmatpush1.xpose.msra.mxu0 0.0
        %1231 = vmatprep.subr.mxu0 0.0
        %1232 = vmatpush1.xpose.msra.mxu0 0.0
        %1233 = vmatprep.subr.mxu0 0.0
        %1234 = vmatpush1.xpose.msra.mxu0 0.0
        %1235 = vmatprep.subr.mxu0 0.0
        %1236 = vmatpush1.xpose.msra.mxu0 0.0
        %1237 = vmatprep.subr.mxu0 0.0
        %1238 = vmatpush1.xpose.msra.mxu0 0.0
        %1239 = vmatprep.mubr.f32.mxu0 0.0
        %1240 = vmatmul.mubr.f32.gmra.mrb[0].mxu0 %v1167
        %v1241 = vpop.f32.mrb[0].mxu0
        %v1242 = vadd.f32 0.0, %v1241
        %v1243 = vpop.f32.mrb[0].mxu0
        %1244 = vmatprep.mubr.f32.mxu0 0.0
        %1245 = vmatmul.mubr.f32.gmra.mrb[0].mxu0 %v1169
        %v1246 = vpop.f32.mrb[0].mxu0
        %v1247 = vadd.f32 0.0, %v1246
        %v1248 = vpop.f32.mrb[0].mxu0
        %1249 = vdwg.mxu0
        %v1250 = vmul.f32 %v1242, 0.17677669
        %v1251 = vmul.f32 %v1247, 0.17677669
        %v1252 = vsel %vm593, %v1250, -inf
        %1253 = vmax.xlane.f32.xlu0 %v1252
        %v1254 = vpop.xlane.xlu0 %1253
        %v1255 = vsel %vm593, %v1251, -inf
        %1256 = vmax.xlane.f32.xlu0 %v1255
        %v1257 = vpop.xlane.xlu0 %1256
        %v1258 = vsub.f32 %v1250, %v1254
        %v1259 = vsub.f32 %v1251, %v1257
        %v1260 = vmul.f32 %v1258, 1.442695
        %v1261 = vpow.pop %v1260
        %v1262 = vmul.f32 %v1259, 1.442695
        %v1263 = vpow.pop %v1262
        %v1264 = vsel %vm593, %v1261, 0.0
        %1265 = vadd.xlane.f32.xlu0 %v1264
        %v1266 = vpop.xlane.xlu0 %1265
        %v1267 = vsel %vm593, %v1263, 0.0
        %1268 = vadd.xlane.f32.xlu0 %v1267
        %v1269 = vpop.xlane.xlu0 %1268
        %v1270 = vrcp.pop %v1266
        %v1271 = vmul.f32 %v1261, %v1270
        %v1272 = vrcp.pop %v1269
        %v1273 = vmul.f32 %v1263, %v1272
        %1276 = vrot.lane.b32.xlu0 %v1153, 32
        %v1277 = vpop.permute.xlu0 %1276
        %1278 = vrot.lane.b32.xlu0 %v1154, 32
        %v1279 = vpop.permute.xlu0 %1278
        %v1283 = vsel %vm593, %v1271, 0
        %v1286 = vsel %vm593, %v1273, 0
        %1288 = vmatprep.subr.mxu0 0.0
        %1289 = vmatpush1.msra.mxu0 %v1277
        %1290 = vmatprep.subr.mxu0 0.0
        %1291 = vmatpush1.msra.mxu0 %v1279
        %1292 = vmatprep.subr.mxu0 0.0
        %1293 = vmatpush1.msra.mxu0 0.0
        %1294 = vmatprep.subr.mxu0 0.0
        %1295 = vmatpush1.msra.mxu0 0.0
        %1296 = vmatprep.subr.mxu0 0.0
        %1297 = vmatpush1.msra.mxu0 0.0
        %1298 = vmatprep.subr.mxu0 0.0
        %1299 = vmatpush1.msra.mxu0 0.0
        %1300 = vmatprep.subr.mxu0 0.0
        %1301 = vmatpush1.msra.mxu0 0.0
        %1302 = vmatprep.subr.mxu0 0.0
        %1303 = vmatpush1.msra.mxu0 0.0
        %1304 = vmatprep.subr.mxu0 0.0
        %1305 = vmatpush1.msra.mxu0 0.0
        %1306 = vmatprep.subr.mxu0 0.0
        %1307 = vmatpush1.msra.mxu0 0.0
        %1308 = vmatprep.subr.mxu0 0.0
        %1309 = vmatpush1.msra.mxu0 0.0
        %1310 = vmatprep.subr.mxu0 0.0
        %1311 = vmatpush1.msra.mxu0 0.0
        %1312 = vmatprep.subr.mxu0 0.0
        %1313 = vmatpush1.msra.mxu0 0.0
        %1314 = vmatprep.subr.mxu0 0.0
        %1315 = vmatpush1.msra.mxu0 0.0
        %1316 = vmatprep.subr.mxu0 0.0
        %1317 = vmatpush1.msra.mxu0 0.0
        %1318 = vmatprep.subr.mxu0 0.0
        %1319 = vmatpush1.msra.mxu0 0.0
        %1320 = vmatprep.subr.mxu0 0.0
        %1321 = vmatpush1.msra.mxu0 0.0
        %1322 = vmatprep.subr.mxu0 0.0
        %1323 = vmatpush1.msra.mxu0 0.0
        %1324 = vmatprep.subr.mxu0 0.0
        %1325 = vmatpush1.msra.mxu0 0.0
        %1326 = vmatprep.subr.mxu0 0.0
        %1327 = vmatpush1.msra.mxu0 0.0
        %1328 = vmatprep.subr.mxu0 0.0
        %1329 = vmatpush1.msra.mxu0 0.0
        %1330 = vmatprep.subr.mxu0 0.0
        %1331 = vmatpush1.msra.mxu0 0.0
        %1332 = vmatprep.subr.mxu0 0.0
        %1333 = vmatpush1.msra.mxu0 0.0
        %1334 = vmatprep.subr.mxu0 0.0
        %1335 = vmatpush1.msra.mxu0 0.0
        %1336 = vmatprep.subr.mxu0 0.0
        %1337 = vmatpush1.msra.mxu0 0.0
        %1338 = vmatprep.subr.mxu0 0.0
        %1339 = vmatpush1.msra.mxu0 0.0
        %1340 = vmatprep.subr.mxu0 0.0
        %1341 = vmatpush1.msra.mxu0 0.0
        %1342 = vmatprep.subr.mxu0 0.0
        %1343 = vmatpush1.msra.mxu0 0.0
        %1344 = vmatprep.subr.mxu0 0.0
        %1345 = vmatpush1.msra.mxu0 0.0
        %1346 = vmatprep.subr.mxu0 0.0
        %1347 = vmatpush1.msra.mxu0 0.0
        %1348 = vmatprep.subr.mxu0 0.0
        %1349 = vmatpush1.msra.mxu0 0.0
        %1350 = vmatprep.subr.mxu0 0.0
        %1351 = vmatpush1.msra.mxu0 0.0
        %1352 = vmatprep.mubr.f32.mxu0 0.0
        %1353 = vmatmul.mubr.f32.gmra.mrb[0].mxu0 %v1283
        %v1354 = vpop.f32.mrb[0].mxu0
        %v1355 = vadd.f32 0.0, %v1354
        %v1356 = vpop.f32.mrb[0].mxu0
        %1357 = vmatprep.mubr.f32.mxu0 0.0
        %1358 = vmatmul.mubr.f32.gmra.mrb[0].mxu0 %v1286
        %v1359 = vpop.f32.mrb[0].mxu0
        %v1360 = vadd.f32 0.0, %v1359
        %v1361 = vpop.f32.mrb[0].mxu0
        %1362 = vdwg.mxu0
        %1365 = vrot.lane.b32.xlu0 %v1355, 96
        %v1366 = vpop.permute.xlu0 %1365
        %1367 = vrot.lane.b32.xlu0 %v1360, 96
        %v1368 = vpop.permute.xlu0 %1367
        %vm1371 = vcmask 1048320
        %1372 = vst.msk [vmem:[#allocation3] sm:$0xff] %vm1371, %v1366
        %1373 = vst.msk [vmem:[#allocation3 + $0x8] sm:$0xff] %vm1371, %v1368
        %v1374 = vld [vmem:[#allocation3] sm:$0xff]
        %v1375 = vld [vmem:[#allocation3 + $0x8] sm:$0xff]
        %v1376 = vld [vmem:[#allocation9] sm:$0xff]
        %v1377 = vld [vmem:[#allocation9 + $0x8] sm:$0xff]
        %v1378 = vld [vmem:[#allocation9 + $0x10] sm:$0xff]
        %v1379 = vld [vmem:[#allocation9 + $0x18] sm:$0xff]
        %v1380 = vld [vmem:[#allocation9 + $0x20] sm:$0xff]
        %v1381 = vld [vmem:[#allocation9 + $0x28] sm:$0xff]
        %v1382 = vld [vmem:[#allocation9 + $0x30] sm:$0xff]
        %v1383 = vld [vmem:[#allocation9 + $0x38] sm:$0xff]
        %v1384 = vld [vmem:[#allocation9 + $0x40] sm:$0xff]
        %v1385 = vld [vmem:[#allocation9 + $0x48] sm:$0xff]
        %v1386 = vld [vmem:[#allocation9 + $0x50] sm:$0xff]
        %v1387 = vld [vmem:[#allocation9 + $0x58] sm:$0xff]
        %v1388 = vld [vmem:[#allocation9 + $0x60] sm:$0xff]
        %v1389 = vld [vmem:[#allocation9 + $0x68] sm:$0xff]
        %v1390 = vld [vmem:[#allocation9 + $0x70] sm:$0xff]
        %v1391 = vld [vmem:[#allocation9 + $0x78] sm:$0xff]
        %v1392 = vld [vmem:[%s4] sm:$0x1]
        %v1394 = vlaneseq
        %v1395 = vshrl.u32 %v1394, 7
        %v1396 = vsub.s32 0, %v1395
        %v1397 = vrot.slane %v1392, %v1396
        %1399 = vmatprep.subr.mxu0 0.0
        %1400 = vmatpush1.msra.mxu0 %v1376
        %1401 = vmatprep.subr.mxu0 0.0
        %1402 = vmatpush1.msra.mxu0 %v1377
        %1403 = vmatprep.subr.mxu0 0.0
        %1404 = vmatpush1.msra.mxu0 %v1378
        %1405 = vmatprep.subr.mxu0 0.0
        %1406 = vmatpush1.msra.mxu0 %v1379
        %1407 = vmatprep.subr.mxu0 0.0
        %1408 = vmatpush1.msra.mxu0 %v1380
        %1409 = vmatprep.subr.mxu0 0.0
        %1410 = vmatpush1.msra.mxu0 %v1381
        %1411 = vmatprep.subr.mxu0 0.0
        %1412 = vmatpush1.msra.mxu0 %v1382
        %1413 = vmatprep.subr.mxu0 0.0
        %1414 = vmatpush1.msra.mxu0 %v1383
        %1415 = vmatprep.subr.mxu0 0.0
        %1416 = vmatpush1.msra.mxu0 %v1384
        %1417 = vmatprep.subr.mxu0 0.0
        %1418 = vmatpush1.msra.mxu0 %v1385
        %1419 = vmatprep.subr.mxu0 0.0
        %1420 = vmatpush1.msra.mxu0 %v1386
        %1421 = vmatprep.subr.mxu0 0.0
        %1422 = vmatpush1.msra.mxu0 %v1387
        %1423 = vmatprep.subr.mxu0 0.0
        %1424 = vmatpush1.msra.mxu0 %v1388
        %1425 = vmatprep.subr.mxu0 0.0
        %1426 = vmatpush1.msra.mxu0 %v1389
        %1427 = vmatprep.subr.mxu0 0.0
        %1428 = vmatpush1.msra.mxu0 %v1390
        %1429 = vmatprep.subr.mxu0 0.0
        %1430 = vmatpush1.msra.mxu0 %v1391
        %1431 = vmatprep.subr.mxu0 0.0
        %1432 = vmatpush1.msra.mxu0 0.0
        %1433 = vmatprep.subr.mxu0 0.0
        %1434 = vmatpush1.msra.mxu0 0.0
        %1435 = vmatprep.subr.mxu0 0.0
        %1436 = vmatpush1.msra.mxu0 0.0
        %1437 = vmatprep.subr.mxu0 0.0
        %1438 = vmatpush1.msra.mxu0 0.0
        %1439 = vmatprep.subr.mxu0 0.0
        %1440 = vmatpush1.msra.mxu0 0.0
        %1441 = vmatprep.subr.mxu0 0.0
        %1442 = vmatpush1.msra.mxu0 0.0
        %1443 = vmatprep.subr.mxu0 0.0
        %1444 = vmatpush1.msra.mxu0 0.0
        %1445 = vmatprep.subr.mxu0 0.0
        %1446 = vmatpush1.msra.mxu0 0.0
        %1447 = vmatprep.subr.mxu0 0.0
        %1448 = vmatpush1.msra.mxu0 0.0
        %1449 = vmatprep.subr.mxu0 0.0
        %1450 = vmatpush1.msra.mxu0 0.0
        %1451 = vmatprep.subr.mxu0 0.0
        %1452 = vmatpush1.msra.mxu0 0.0
        %1453 = vmatprep.subr.mxu0 0.0
        %1454 = vmatpush1.msra.mxu0 0.0
        %1455 = vmatprep.subr.mxu0 0.0
        %1456 = vmatpush1.msra.mxu0 0.0
        %1457 = vmatprep.subr.mxu0 0.0
        %1458 = vmatpush1.msra.mxu0 0.0
        %1459 = vmatprep.subr.mxu0 0.0
        %1460 = vmatpush1.msra.mxu0 0.0
        %1461 = vmatprep.subr.mxu0 0.0
        %1462 = vmatpush1.msra.mxu0 0.0
        %1463 = vmatprep.mubr.f32.mxu0 0.0
        %1464 = vmatmul.mubr.f32.gmra.mrb[0].mxu0 %v1374
        %v1465 = vpop.f32.mrb[0].mxu0
        %v1466 = vadd.f32 %v1397, %v1465
        %v1467 = vpop.f32.mrb[0].mxu0
        %1468 = vmatprep.mubr.f32.mxu0 0.0
        %1469 = vmatmul.mubr.f32.gmra.mrb[0].mxu0 %v1375
        %v1470 = vpop.f32.mrb[0].mxu0
        %v1471 = vadd.f32 %v1397, %v1470
        %v1472 = vpop.f32.mrb[0].mxu0
        %1473 = vdwg.mxu0
        %1474 = vst [vmem:[%s271] sm:$0xff] %v1466
        %1475 = vst [vmem:[%s271 + $0x8] sm:$0xff] %v1471
        %s1476 = sand.u32 %s141, 1
        %s1477 = scalar_lea.sflag [#allocation6], %s1476
        %s1478 = sand.u32 %s141, 1
        %s1479 = smul.addr %s1478, 16
        %s1480 = scalar_lea.vmem [#allocation10], %s1479
        // Predicated region
        $region53: #{_lambda_.1} parent=39 // pred_check
          %p1481 = pneg %p151
        $region54: #{_lambda_.1} parent=39 // pred_check_branch
          %1483 = sbr.rel (%p1481) target = $region56
        $region55: #{_lambda_.1} parent=39 // pred_region
          %s1485 = ssub.s32 256, 256
          %1486 = vsyncadd %s1477, %s1485
          %s1487 = smul.addr %s23, 2
          %s1488 = smul.addr %s1487, 128
          %s1489 = scalar_lea.hbm %s5, %s1488
          %s1490 = sshll.u32 %s1480, 4
          %s1491 = int_to_ptr.vmem [resolvable:$true] %s1490
          %1496 = dma.vmem_to_hbm [thread:$0]  %s1491, 256, %s1489, %s1477, 128, 128, 8
        $region56: #{_lambda_.1} parent=39 // pred_fallthru
          _
      $region40: #{_lambda_.1} parent=5 // pred_fallthru
        _
      %p1497 = scmp.le.s32.totalorder 2, %s18
      // Predicated region
      $region57: #{_lambda_.1} parent=5 // pred_check
        %p1498 = pneg %p1497
      $region58: #{_lambda_.1} parent=5 // pred_check_branch
        %1500 = sbr.rel (%p1498) target = $region60
      $region59: #{_lambda_.1} parent=5 // pred_region
        %s1501 = ssub.s32 %s18, 2
        // Predicated region
        $region61: #{_lambda_.1} parent=59 // pred_check
          %p1502 = pneg %p157
        $region62: #{_lambda_.1} parent=59 // pred_check_branch
          %1504 = sbr.rel (%p1502) target = $region64
        $region63: #{_lambda_.1} parent=59 // pred_region
          %s1505 = sand.u32 %s142, 1
          %s1506 = scalar_lea.sflag [#allocation6], %s1505
          %s1507 = sand.u32 %s142, 1
          %s1508 = smul.addr %s1507, 16
          %s1509 = scalar_lea.vmem [#allocation10], %s1508
          %1510 = dma.done %s1506, 256
        $region64: #{_lambda_.1} parent=59 // pred_fallthru
          _
      $region60: #{_lambda_.1} parent=5 // pred_fallthru
        _
    $region6: #{_lambda_.1} parent=1 // loop_footer
      %s22 = sadd.s32 1, %s18
    $region7: #{_lambda_.1} parent=1 // loop_footer_branch
      %17 = sbr.rel target = $region3
    $region8: #{_lambda_.1} parent=1 // loop_exit
      _
    %1511 = vsyncpa [#allocation5], 1
    %s1512 = scalar_lea.sflag [#allocation5], 1
    %1513 = vsyncpa %s1512, 1
    %1514 = vsyncpa [#allocation8], 1
    %1515 = vsyncpa [#allocation6], 1
    %s1516 = scalar_lea.sflag [#allocation6], 1
    %1517 = vsyncpa %s1516, 1

</llo_original>
